<compile_context>
chip_gen: v7x
topology: tpu7x:2x2x1
jax: 0.10.0
libtpu: 0.0.40
codegen_flags: <defaults>
</compile_context>

<pallas_src>
import functools

import jax
import jax.numpy as jnp
from jax import lax
from jax.experimental import pallas as pl
from jax.experimental.pallas import tpu as pltpu


# ----------------------------------------------------------------------------
# Kernel A: TCN stage + GRU input-side projections, one batch element per step.
# ----------------------------------------------------------------------------
def tcn_kernel(
    x_ref,      # [1, D, T]
    mask_ref,   # [1, 1, T]
    w_in_ref,   # [F, D]
    b_in_ref,   # [F, 1]
    wd_ref,     # [L, F, 3F]   fused dilated taps [tap(t-2d) | tap(t-d) | tap(t)]
    bd_ref,     # [L, F, 1]
    w1_ref,     # [L, F, F]
    b1_ref,     # [L, F, 1]
    w_ih_ref,   # [F, GP]      GRU input weights [r | z | n | 0-pad] (transposed)
    b_ih_ref,   # [1, GP]
    out_ref,    # [1, F, T]    TCN features (channels-first)
    pre_ref,    # [1, T, GP]   GRU input-side projections (time-major, lane-dense)
    *,
    dilations,
):
    Fm = w_in_ref.shape[0]
    T = x_ref.shape[2]

    x = x_ref[0]      # [D, T]
    m = mask_ref[0]   # [1, T]

    # --- input 1x1 conv (dim -> num_f_maps) ---
    out = jnp.dot(w_in_ref[...], x, preferred_element_type=jnp.float32) + b_in_ref[...]

    lane_idx = lax.broadcasted_iota(jnp.int32, (Fm, T), 1)

    # --- causal dilated residual layers ---
    # Replicate left padding (PyTorch padding_mode='replicate', padding=2*dilation,
    # followed by [..., :-2*dilation]): roll on the XLU + select of column 0.
    for l, d in enumerate(dilations):
        first = out[:, 0:1]                                                 # [F, 1]
        x1 = jnp.where(lane_idx < d, first, pltpu.roll(out, d, 1))          # out[t-d]
        x2 = jnp.where(lane_idx < 2 * d, first, pltpu.roll(out, 2 * d, 1))  # out[t-2d]
        xcat = jnp.concatenate([x2, x1, out], axis=0)                       # [3F, T]
        conv = jnp.dot(wd_ref[l], xcat, preferred_element_type=jnp.float32) + bd_ref[l]
        conv = jnp.maximum(conv, 0.0)
        conv = jnp.dot(w1_ref[l], conv, preferred_element_type=jnp.float32) + b1_ref[l]
        # TODO(synk): nn.Dropout treated as identity (inference mode).
        out = (out + conv) * m

    out_ref[0] = out

    # --- GRU input-side projections for every timestep (one wide, lane-dense matmul) ---
    # TODO(synk): cast matmul operands to bf16 on v6e/v7x for HBM/VMEM headroom.
    pre_ref[0] = (jnp.dot(out.T, w_ih_ref[...], preferred_element_type=jnp.float32)
                  + b_ih_ref[...])                                          # [T, GP]


# ----------------------------------------------------------------------------
# Kernel B: ONE batched GRU recurrence over all B sequences + fused output heads.
# ----------------------------------------------------------------------------
def gru_head_kernel(
    pre_ref,    # [B, T, GP]   GRU input-side projections
    feat_ref,   # [B, F, T]    TCN features
    mask_ref,   # [B, 1, T]
    w_hh_ref,   # [F, GP]      GRU hidden weights [r | z | n | 0-pad] (transposed)
    b_hh_ref,   # [1, GP]
    w_big_ref,  # [2C, 2F]     [[0, w_app], [w_fus_p@w_out, w_fus_g@w_app]]
    b_big_ref,  # [2C, 1]      [b_app ; folded fusion bias]
    out_ref,    # [B, C, T]
    prog_ref,   # [B, C, T]
    gru_buf,    # scratch VMEM [T, B, F]
    *,
    chunk,
):
    B = pre_ref.shape[0]
    T = pre_ref.shape[1]
    Fm = w_hh_ref.shape[0]
    C = w_big_ref.shape[0] // 2

    # Loop-invariant hidden-side weights: read once so the MXU RHS push is hoisted out
    # of the serial recurrence.
    w_hh = w_hh_ref[...]   # [F, GP]
    b_hh = b_hh_ref[...]   # [1, GP]

    # --- batched unidirectional GRU over time; h carried as a [B, F] vreg value ---
    def chunk_body(c, h):
        base = pl.multiple_of(c * chunk, chunk)
        pre_c = pre_ref[:, pl.ds(base, chunk), :]          # [B, chunk, GP] dense load
        for i in range(chunk):                             # manual 8x unroll
            pre_t = pre_c[:, i, :]                         # [B, GP]
            hh = jnp.dot(h, w_hh, preferred_element_type=jnp.float32) + b_hh  # [B, GP]
            r = jax.nn.sigmoid(pre_t[:, 0:Fm] + hh[:, 0:Fm])
            z = jax.nn.sigmoid(pre_t[:, Fm:2 * Fm] + hh[:, Fm:2 * Fm])
            n = jnp.tanh(pre_t[:, 2 * Fm:3 * Fm] + r * hh[:, 2 * Fm:3 * Fm])
            h = (1.0 - z) * n + z * h                      # [B, F]
            gru_buf[base + i] = h
        return h

    lax.fori_loop(0, T // chunk, chunk_body, jnp.zeros((B, Fm), jnp.float32))

    gru_all = gru_buf[...]                                 # [T, B, F]
    w_big = w_big_ref[...]                                 # [2C, 2F]
    b_big = b_big_ref[...]                                 # [2C, 1]

    # --- fused output heads: one [2C, 2F] x [2F, T] matmul per batch element ---
    for b in range(B):
        gru_b = gru_all[:, b, :].T                         # [F, T]
        feats = jnp.concatenate([feat_ref[b], gru_b], axis=0)   # [2F, T]
        heads = jnp.dot(w_big, feats, preferred_element_type=jnp.float32) + b_big
        m = mask_ref[b]                                    # [1, T]
        prog_ref[b] = heads[0:C, :] * m                    # progress head
        out_ref[b] = heads[C:2 * C, :] * m                 # folded prob/progress fusion


# ----------------------------------------------------------------------------
# Wrapper / glue
# ----------------------------------------------------------------------------
def single_stage_forward(x, mask1, p, *, chunk=8):
    B, D, T = x.shape
    Fm = p["w_in"].shape[0]
    C = p["w_out"].shape[0]
    assert T % 128 == 0 and T % chunk == 0, "T must be a multiple of 128 (and of chunk)"

    gp = ((3 * Fm + 127) // 128) * 128      # gate width padded to a full lane multiple
    pad = gp - 3 * Fm

    # Host-side weight folding / fusion (cheap, once per call).
    wd_cat = jnp.concatenate([p["wd"][:, 0], p["wd"][:, 1], p["wd"][:, 2]], axis=2)  # [L,F,3F]
    w_ih_cat = jnp.pad(
        jnp.concatenate([p["w_ih_T"][0], p["w_ih_T"][1], p["w_ih_T"][2]], axis=1),
        ((0, 0), (0, pad)))                                                           # [F,GP]
    w_hh_cat = jnp.pad(
        jnp.concatenate([p["w_hh_T"][0], p["w_hh_T"][1], p["w_hh_T"][2]], axis=1),
        ((0, 0), (0, pad)))                                                           # [F,GP]
    b_ih_cat = jnp.pad(
        jnp.concatenate([p["b_ih2"][0], p["b_ih2"][1], p["b_ih2"][2]], axis=1),
        ((0, 0), (0, pad)))                                                           # [1,GP]
    b_hh_cat = jnp.pad(
        jnp.concatenate([p["b_hh2"][0], p["b_hh2"][1], p["b_hh2"][2]], axis=1),
        ((0, 0), (0, pad)))                                                           # [1,GP]
    # Fold the 1x1 fusion conv into the heads (exact because the mask is {0,1} and
    # broadcasts over channels), then stack both heads into one block matrix.
    w_fp = p["w_fus_p"] @ p["w_out"]                                                  # [C,F]
    w_fg = p["w_fus_g"] @ p["w_app"]                                                  # [C,F]
    b_fus_tot = p["w_fus_p"] @ p["b_out"] + p["w_fus_g"] @ p["b_app"] + p["b_fus"]    # [C,1]
    w_big = jnp.concatenate(
        [jnp.concatenate([jnp.zeros((C, Fm), jnp.float32), p["w_app"]], axis=1),
         jnp.concatenate([w_fp, w_fg], axis=1)], axis=0)                              # [2C,2F]
    b_big = jnp.concatenate([p["b_app"], b_fus_tot], axis=0)                          # [2C,1]

    def fixed_spec(a):
        nd = a.ndim
        return pl.BlockSpec(a.shape, lambda b, _nd=nd: (0,) * _nd)

    # --- kernel A: TCN + GRU input projections, pipelined / megacore-parallel over B ---
    a_weights = [p["w_in"], p["b_in"], wd_cat, p["bd"], p["w1"], p["b1"],
                 w_ih_cat, b_ih_cat]
    out_tcn, pre = pl.pallas_call(
        functools.partial(tcn_kernel, dilations=tuple(p["dilations"])),
        out_shape=(jax.ShapeDtypeStruct((B, Fm, T), jnp.float32),
                   jax.ShapeDtypeStruct((B, T, gp), jnp.float32)),
        grid_spec=pltpu.PrefetchScalarGridSpec(
            num_scalar_prefetch=0, grid=(B,),
            in_specs=[pl.BlockSpec((1, D, T), lambda b: (b, 0, 0)),
                      pl.BlockSpec((1, 1, T), lambda b: (b, 0, 0))]
                     + [fixed_spec(a) for a in a_weights],
            out_specs=[pl.BlockSpec((1, Fm, T), lambda b: (b, 0, 0)),
                       pl.BlockSpec((1, T, gp), lambda b: (b, 0, 0))]),
        compiler_params=pltpu.CompilerParams(
            dimension_semantics=("parallel",),
            vmem_limit_bytes=32 * 1024 * 1024),
    )(x, mask1, *a_weights)

    # --- kernel B: one batched GRU recurrence over all B + fused output heads ---
    b_inputs = [pre, out_tcn, mask1, w_hh_cat, b_hh_cat, w_big, b_big]
    fused, prog = pl.pallas_call(
        functools.partial(gru_head_kernel, chunk=chunk),
        out_shape=(jax.ShapeDtypeStruct((B, C, T), jnp.float32),
                   jax.ShapeDtypeStruct((B, C, T), jnp.float32)),
        grid_spec=pltpu.PrefetchScalarGridSpec(
            num_scalar_prefetch=0, grid=(1,),
            in_specs=[fixed_spec(a) for a in b_inputs],
            out_specs=[pl.BlockSpec((B, C, T), lambda i: (0, 0, 0)),
                       pl.BlockSpec((B, C, T), lambda i: (0, 0, 0))],
            scratch_shapes=[pltpu.VMEM((T, B, Fm), jnp.float32)]),
        compiler_params=pltpu.CompilerParams(
            dimension_semantics=("arbitrary",),
            vmem_limit_bytes=32 * 1024 * 1024),
    )(*b_inputs)
    return fused, prog


# ----------------------------------------------------------------------------
# Pure-JAX reference (literal original math; used only to validate the kernels)
# ----------------------------------------------------------------------------
def reference_forward(x, mask1, p):
    T = x.shape[-1]
    hi = jax.lax.Precision.HIGHEST
    ein = functools.partial(jnp.einsum, precision=hi)

    out = ein("fd,bdt->bft", p["w_in"], x) + p["b_in"][None]
    for l, d in enumerate(p["dilations"]):
        idx1 = jnp.maximum(jnp.arange(T) - d, 0)
        idx2 = jnp.maximum(jnp.arange(T) - 2 * d, 0)
        x1, x2 = out[:, :, idx1], out[:, :, idx2]
        conv = (ein("of,bft->bot", p["wd"][l, 0], x2)
                + ein("of,bft->bot", p["wd"][l, 1], x1)
                + ein("of,bft->bot", p["wd"][l, 2], out)
                + p["bd"][l][None])
        conv = jnp.maximum(conv, 0.0)
        conv = ein("of,bft->bot", p["w1"][l], conv) + p["b1"][l][None]
        out = (out + conv) * mask1
    prob = (ein("cf,bft->bct", p["w_out"], out) + p["b_out"][None]) * mask1

    out_t = jnp.transpose(out, (0, 2, 1))                      # [B, T, F]
    w_ih_T, w_hh_T = p["w_ih_T"], p["w_hh_T"]
    b_ih2, b_hh2 = p["b_ih2"], p["b_hh2"]

    def cell(h, xt):                                           # h, xt: [B, F]
        r = jax.nn.sigmoid(xt @ w_ih_T[0] + b_ih2[0] + h @ w_hh_T[0] + b_hh2[0])
        z = jax.nn.sigmoid(xt @ w_ih_T[1] + b_ih2[1] + h @ w_hh_T[1] + b_hh2[1])
        n = jnp.tanh(xt @ w_ih_T[2] + b_ih2[2] + r * (h @ w_hh_T[2] + b_hh2[2]))
        h_new = (1.0 - z) * n + z * h
        return h_new, h_new

    B, _, F = out_t.shape
    h0 = jnp.zeros((B, F), jnp.float32)
    _, hs = jax.lax.scan(cell, h0, jnp.transpose(out_t, (1, 0, 2)))   # [T, B, F]
    gru_out = jnp.transpose(hs, (1, 2, 0))                            # [B, F, T]

    prog = (ein("cf,bft->bct", p["w_app"], gru_out) + p["b_app"][None]) * mask1
    fused = (ein("co,bot->bct", p["w_fus_p"], prob)
             + ein("co,bot->bct", p["w_fus_g"], prog)
             + p["b_fus"][None]) * mask1
    return fused, prog


# ----------------------------------------------------------------------------
if __name__ == "__main__":
    # batch, dim, num_f_maps, num_classes, seq (multiple of 128 => lane-dense), layers
    B, D, F, C, T, L = 2, 16, 32, 8, 128, 3
    dilations = [2 ** i for i in range(L)]

    key = jax.random.PRNGKey(0)
    ks = list(jax.random.split(key, 32))

    def rnd(k, shape, scale=0.1):
        return scale * jax.random.normal(k, shape, dtype=jnp.float32)

    p = {
        "dilations": dilations,
        "w_in": rnd(ks[0], (F, D)),       "b_in": rnd(ks[1], (F, 1)),
        "wd":   rnd(ks[2], (L, 3, F, F)), "bd":  rnd(ks[3], (L, F, 1)),
        "w1":   rnd(ks[4], (L, F, F)),    "b1":  rnd(ks[5], (L, F, 1)),
        "w_out": rnd(ks[6], (C, F)),      "b_out": rnd(ks[7], (C, 1)),
        "w_ih_T": rnd(ks[8], (3, F, F)),  "b_ih2": rnd(ks[9], (3, 1, F)),
        "w_hh_T": rnd(ks[10], (3, F, F)), "b_hh2": rnd(ks[11], (3, 1, F)),
        "w_app": rnd(ks[12], (C, F)),     "b_app": rnd(ks[13], (C, 1)),
        "w_fus_p": rnd(ks[14], (C, C)),   "w_fus_g": rnd(ks[15], (C, C)),
        "b_fus": rnd(ks[16], (C, 1)),
    }

    x = jax.random.normal(ks[17], (B, D, T), dtype=jnp.float32)
    mask1 = jnp.ones((B, 1, T), dtype=jnp.float32)
    mask1 = mask1.at[1, :, T - 40:].set(0.0)        # simulate padded second sequence (0/1 mask)

    out_k, prog_k = single_stage_forward(x, mask1, p)
    jax.block_until_ready((out_k, prog_k))

    out_r, prog_r = reference_forward(x, mask1, p)

    def rel_err(a, b):
        return float(jnp.max(jnp.abs(a - b)) / (jnp.max(jnp.abs(b)) + 1e-6))

    assert out_k.shape == (B, C, T) and prog_k.shape == (B, C, T)
    # 5e-3 is tight enough to catch gate-ordering / bias-placement / folding bugs (which
    # produce O(1) relative errors) while staying tolerant of MXU f32 precision modes.
    assert rel_err(out_k, out_r) < 5e-3, rel_err(out_k, out_r)
    assert rel_err(prog_k, prog_r) < 5e-3, rel_err(prog_k, prog_r)

    print("KERNEL_OK")
</pallas_src>

<mosaic_0001>
module attributes {stable_mosaic.version = 11 : i64} {
  func.func @tcn_kernel(%arg0: i32, %arg1: memref<1x16x128xf32, #tpu.memory_space<vmem>>, %arg2: memref<1x1x128xf32, #tpu.memory_space<vmem>>, %arg3: memref<32x16xf32, #tpu.memory_space<vmem>>, %arg4: memref<32x1xf32, #tpu.memory_space<vmem>>, %arg5: memref<3x32x96xf32, #tpu.memory_space<vmem>>, %arg6: memref<3x32x1xf32, #tpu.memory_space<vmem>>, %arg7: memref<3x32x32xf32, #tpu.memory_space<vmem>>, %arg8: memref<3x32x1xf32, #tpu.memory_space<vmem>>, %arg9: memref<32x128xf32, #tpu.memory_space<vmem>>, %arg10: memref<1x128xf32, #tpu.memory_space<vmem>>, %arg11: memref<1x32x128xf32, #tpu.memory_space<vmem>>, %arg12: memref<1x128x128xf32, #tpu.memory_space<vmem>>) attributes {dimension_semantics = [#tpu.dimension_semantics<parallel>], iteration_bounds = array<i64: 2>, scalar_prefetch = 0 : i64, scratch_operands = 0 : i64, tpu.core_type = #tpu.core_type<tc>, window_params = [{transform_indices = @transform_0, window_bounds = array<i64: 1, 16, 128>}, {transform_indices = @transform_1, window_bounds = array<i64: 1, 1, 128>}, {pipeline_mode = #tpu.pipeline_mode<synchronous>, transform_indices = @transform_2, window_bounds = array<i64: 32, 16>}, {pipeline_mode = #tpu.pipeline_mode<synchronous>, transform_indices = @transform_3, window_bounds = array<i64: 32, 1>}, {pipeline_mode = #tpu.pipeline_mode<synchronous>, transform_indices = @transform_4, window_bounds = array<i64: 3, 32, 96>}, {pipeline_mode = #tpu.pipeline_mode<synchronous>, transform_indices = @transform_5, window_bounds = array<i64: 3, 32, 1>}, {pipeline_mode = #tpu.pipeline_mode<synchronous>, transform_indices = @transform_6, window_bounds = array<i64: 3, 32, 32>}, {pipeline_mode = #tpu.pipeline_mode<synchronous>, transform_indices = @transform_7, window_bounds = array<i64: 3, 32, 1>}, {pipeline_mode = #tpu.pipeline_mode<synchronous>, transform_indices = @transform_8, window_bounds = array<i64: 32, 128>}, {pipeline_mode = #tpu.pipeline_mode<synchronous>, transform_indices = @transform_9, window_bounds = array<i64: 1, 128>}, {transform_indices = @transform_10, window_bounds = array<i64: 1, 32, 128>}, {transform_indices = @transform_11, window_bounds = array<i64: 1, 128, 128>}]} {
    %c0 = arith.constant 0 : index
    %c0_0 = arith.constant 0 : index
    %c0_1 = arith.constant 0 : index
    %0 = vector.load %arg1[%c0, %c0_0, %c0_1] : memref<1x16x128xf32, #tpu.memory_space<vmem>>, vector<1x16x128xf32>
    %1 = vector.shape_cast %0 : vector<1x16x128xf32> to vector<16x128xf32>
    %c0_2 = arith.constant 0 : index
    %c0_3 = arith.constant 0 : index
    %c0_4 = arith.constant 0 : index
    %2 = vector.load %arg2[%c0_2, %c0_3, %c0_4] : memref<1x1x128xf32, #tpu.memory_space<vmem>>, vector<1x1x128xf32>
    %3 = vector.shape_cast %2 : vector<1x1x128xf32> to vector<1x128xf32>
    %c0_5 = arith.constant 0 : index
    %c0_6 = arith.constant 0 : index
    %4 = vector.load %arg3[%c0_5, %c0_6] : memref<32x16xf32, #tpu.memory_space<vmem>>, vector<32x16xf32>
    %cst = arith.constant dense<0.000000e+00> : vector<32x128xf32>
    %5 = tpu.matmul %4, %1, %cst {dimension_numbers = #tpu.dot_dimension_numbers<[1], [0], [0], [1], [0, 0, 1, 1], [], []>} : vector<32x16xf32>, vector<16x128xf32>, vector<32x128xf32> -> vector<32x128xf32>
    %c0_7 = arith.constant 0 : index
    %c0_8 = arith.constant 0 : index
    %6 = vector.load %arg4[%c0_7, %c0_8] : memref<32x1xf32, #tpu.memory_space<vmem>>, vector<32x1xf32>
    %7 = vector.broadcast %6 : vector<32x1xf32> to vector<32x128xf32>
    %8 = arith.addf %5, %7 : vector<32x128xf32>
    %9 = tpu.iota {dimensions = array<i32: 1>} : vector<32x128xi32>
    %10 = vector.extract_strided_slice %8 {offsets = [0, 0], sizes = [32, 1], strides = [1, 1]} : vector<32x128xf32> to vector<32x1xf32>
    %c1_i32 = arith.constant 1 : i32
    %11 = vector.broadcast %c1_i32 : i32 to vector<32x128xi32>
    %12 = arith.cmpi slt, %9, %11 : vector<32x128xi32>
    %c1_i32_9 = arith.constant 1 : i32
    %13 = tpu.dynamic_rotate %8 by %c1_i32_9 dim 1 : vector<32x128xf32>, i32 -> vector<32x128xf32>
    %14 = vector.shape_cast %10 : vector<32x1xf32> to vector<32x1xf32>
    %15 = vector.broadcast %14 : vector<32x1xf32> to vector<32x128xf32>
    %16 = arith.select %12, %15, %13 : vector<32x128xi1>, vector<32x128xf32>
    %c2_i32 = arith.constant 2 : i32
    %17 = vector.broadcast %c2_i32 : i32 to vector<32x128xi32>
    %18 = arith.cmpi slt, %9, %17 : vector<32x128xi32>
    %c2_i32_10 = arith.constant 2 : i32
    %19 = tpu.dynamic_rotate %8 by %c2_i32_10 dim 1 : vector<32x128xf32>, i32 -> vector<32x128xf32>
    %20 = vector.shape_cast %10 : vector<32x1xf32> to vector<32x1xf32>
    %21 = vector.broadcast %20 : vector<32x1xf32> to vector<32x128xf32>
    %22 = arith.select %18, %21, %19 : vector<32x128xi1>, vector<32x128xf32>
    %23 = tpu.concatenate %22, %16, %8 in 0 : vector<32x128xf32>, vector<32x128xf32>, vector<32x128xf32> -> vector<96x128xf32>
    %c0_11 = arith.constant 0 : index
    %c0_12 = arith.constant 0 : index
    %c0_13 = arith.constant 0 : index
    %24 = vector.load %arg5[%c0_11, %c0_12, %c0_13] : memref<3x32x96xf32, #tpu.memory_space<vmem>>, vector<1x32x96xf32>
    %25 = vector.shape_cast %24 : vector<1x32x96xf32> to vector<32x96xf32>
    %cst_14 = arith.constant dense<0.000000e+00> : vector<32x128xf32>
    %26 = tpu.matmul %25, %23, %cst_14 {dimension_numbers = #tpu.dot_dimension_numbers<[1], [0], [0], [1], [0, 0, 1, 1], [], []>} : vector<32x96xf32>, vector<96x128xf32>, vector<32x128xf32> -> vector<32x128xf32>
    %c0_15 = arith.constant 0 : index
    %c0_16 = arith.constant 0 : index
    %c0_17 = arith.constant 0 : index
    %27 = vector.load %arg6[%c0_15, %c0_16, %c0_17] : memref<3x32x1xf32, #tpu.memory_space<vmem>>, vector<1x32x1xf32>
    %28 = vector.shape_cast %27 : vector<1x32x1xf32> to vector<32x1xf32>
    %29 = vector.broadcast %28 : vector<32x1xf32> to vector<32x128xf32>
    %30 = arith.addf %26, %29 : vector<32x128xf32>
    %cst_18 = arith.constant 0.000000e+00 : f32
    %31 = vector.broadcast %cst_18 : f32 to vector<32x128xf32>
    %32 = arith.maximumf %30, %31 : vector<32x128xf32>
    %c0_19 = arith.constant 0 : index
    %c0_20 = arith.constant 0 : index
    %c0_21 = arith.constant 0 : index
    %33 = vector.load %arg7[%c0_19, %c0_20, %c0_21] : memref<3x32x32xf32, #tpu.memory_space<vmem>>, vector<1x32x32xf32>
    %34 = vector.shape_cast %33 : vector<1x32x32xf32> to vector<32x32xf32>
    %cst_22 = arith.constant dense<0.000000e+00> : vector<32x128xf32>
    %35 = tpu.matmul %34, %32, %cst_22 {dimension_numbers = #tpu.dot_dimension_numbers<[1], [0], [0], [1], [0, 0, 1, 1], [], []>} : vector<32x32xf32>, vector<32x128xf32>, vector<32x128xf32> -> vector<32x128xf32>
    %c0_23 = arith.constant 0 : index
    %c0_24 = arith.constant 0 : index
    %c0_25 = arith.constant 0 : index
    %36 = vector.load %arg8[%c0_23, %c0_24, %c0_25] : memref<3x32x1xf32, #tpu.memory_space<vmem>>, vector<1x32x1xf32>
    %37 = vector.shape_cast %36 : vector<1x32x1xf32> to vector<32x1xf32>
    %38 = vector.broadcast %37 : vector<32x1xf32> to vector<32x128xf32>
    %39 = arith.addf %35, %38 : vector<32x128xf32>
    %40 = arith.addf %8, %39 : vector<32x128xf32>
    %41 = vector.broadcast %3 : vector<1x128xf32> to vector<32x128xf32>
    %42 = arith.mulf %40, %41 : vector<32x128xf32>
    %43 = vector.extract_strided_slice %42 {offsets = [0, 0], sizes = [32, 1], strides = [1, 1]} : vector<32x128xf32> to vector<32x1xf32>
    %c2_i32_26 = arith.constant 2 : i32
    %44 = vector.broadcast %c2_i32_26 : i32 to vector<32x128xi32>
    %45 = arith.cmpi slt, %9, %44 : vector<32x128xi32>
    %c2_i32_27 = arith.constant 2 : i32
    %46 = tpu.dynamic_rotate %42 by %c2_i32_27 dim 1 : vector<32x128xf32>, i32 -> vector<32x128xf32>
    %47 = vector.shape_cast %43 : vector<32x1xf32> to vector<32x1xf32>
    %48 = vector.broadcast %47 : vector<32x1xf32> to vector<32x128xf32>
    %49 = arith.select %45, %48, %46 : vector<32x128xi1>, vector<32x128xf32>
    %c4_i32 = arith.constant 4 : i32
    %50 = vector.broadcast %c4_i32 : i32 to vector<32x128xi32>
    %51 = arith.cmpi slt, %9, %50 : vector<32x128xi32>
    %c4_i32_28 = arith.constant 4 : i32
    %52 = tpu.dynamic_rotate %42 by %c4_i32_28 dim 1 : vector<32x128xf32>, i32 -> vector<32x128xf32>
    %53 = vector.shape_cast %43 : vector<32x1xf32> to vector<32x1xf32>
    %54 = vector.broadcast %53 : vector<32x1xf32> to vector<32x128xf32>
    %55 = arith.select %51, %54, %52 : vector<32x128xi1>, vector<32x128xf32>
    %56 = tpu.concatenate %55, %49, %42 in 0 : vector<32x128xf32>, vector<32x128xf32>, vector<32x128xf32> -> vector<96x128xf32>
    %c1 = arith.constant 1 : index
    %c0_29 = arith.constant 0 : index
    %c0_30 = arith.constant 0 : index
    %57 = vector.load %arg5[%c1, %c0_29, %c0_30] : memref<3x32x96xf32, #tpu.memory_space<vmem>>, vector<1x32x96xf32>
    %58 = vector.shape_cast %57 : vector<1x32x96xf32> to vector<32x96xf32>
    %cst_31 = arith.constant dense<0.000000e+00> : vector<32x128xf32>
    %59 = tpu.matmul %58, %56, %cst_31 {dimension_numbers = #tpu.dot_dimension_numbers<[1], [0], [0], [1], [0, 0, 1, 1], [], []>} : vector<32x96xf32>, vector<96x128xf32>, vector<32x128xf32> -> vector<32x128xf32>
    %c1_32 = arith.constant 1 : index
    %c0_33 = arith.constant 0 : index
    %c0_34 = arith.constant 0 : index
    %60 = vector.load %arg6[%c1_32, %c0_33, %c0_34] : memref<3x32x1xf32, #tpu.memory_space<vmem>>, vector<1x32x1xf32>
    %61 = vector.shape_cast %60 : vector<1x32x1xf32> to vector<32x1xf32>
    %62 = vector.broadcast %61 : vector<32x1xf32> to vector<32x128xf32>
    %63 = arith.addf %59, %62 : vector<32x128xf32>
    %cst_35 = arith.constant 0.000000e+00 : f32
    %64 = vector.broadcast %cst_35 : f32 to vector<32x128xf32>
    %65 = arith.maximumf %63, %64 : vector<32x128xf32>
    %c1_36 = arith.constant 1 : index
    %c0_37 = arith.constant 0 : index
    %c0_38 = arith.constant 0 : index
    %66 = vector.load %arg7[%c1_36, %c0_37, %c0_38] : memref<3x32x32xf32, #tpu.memory_space<vmem>>, vector<1x32x32xf32>
    %67 = vector.shape_cast %66 : vector<1x32x32xf32> to vector<32x32xf32>
    %cst_39 = arith.constant dense<0.000000e+00> : vector<32x128xf32>
    %68 = tpu.matmul %67, %65, %cst_39 {dimension_numbers = #tpu.dot_dimension_numbers<[1], [0], [0], [1], [0, 0, 1, 1], [], []>} : vector<32x32xf32>, vector<32x128xf32>, vector<32x128xf32> -> vector<32x128xf32>
    %c1_40 = arith.constant 1 : index
    %c0_41 = arith.constant 0 : index
    %c0_42 = arith.constant 0 : index
    %69 = vector.load %arg8[%c1_40, %c0_41, %c0_42] : memref<3x32x1xf32, #tpu.memory_space<vmem>>, vector<1x32x1xf32>
    %70 = vector.shape_cast %69 : vector<1x32x1xf32> to vector<32x1xf32>
    %71 = vector.broadcast %70 : vector<32x1xf32> to vector<32x128xf32>
    %72 = arith.addf %68, %71 : vector<32x128xf32>
    %73 = arith.addf %42, %72 : vector<32x128xf32>
    %74 = vector.broadcast %3 : vector<1x128xf32> to vector<32x128xf32>
    %75 = arith.mulf %73, %74 : vector<32x128xf32>
    %76 = vector.extract_strided_slice %75 {offsets = [0, 0], sizes = [32, 1], strides = [1, 1]} : vector<32x128xf32> to vector<32x1xf32>
    %c4_i32_43 = arith.constant 4 : i32
    %77 = vector.broadcast %c4_i32_43 : i32 to vector<32x128xi32>
    %78 = arith.cmpi slt, %9, %77 : vector<32x128xi32>
    %c4_i32_44 = arith.constant 4 : i32
    %79 = tpu.dynamic_rotate %75 by %c4_i32_44 dim 1 : vector<32x128xf32>, i32 -> vector<32x128xf32>
    %80 = vector.shape_cast %76 : vector<32x1xf32> to vector<32x1xf32>
    %81 = vector.broadcast %80 : vector<32x1xf32> to vector<32x128xf32>
    %82 = arith.select %78, %81, %79 : vector<32x128xi1>, vector<32x128xf32>
    %c8_i32 = arith.constant 8 : i32
    %83 = vector.broadcast %c8_i32 : i32 to vector<32x128xi32>
    %84 = arith.cmpi slt, %9, %83 : vector<32x128xi32>
    %c8_i32_45 = arith.constant 8 : i32
    %85 = tpu.dynamic_rotate %75 by %c8_i32_45 dim 1 : vector<32x128xf32>, i32 -> vector<32x128xf32>
    %86 = vector.shape_cast %76 : vector<32x1xf32> to vector<32x1xf32>
    %87 = vector.broadcast %86 : vector<32x1xf32> to vector<32x128xf32>
    %88 = arith.select %84, %87, %85 : vector<32x128xi1>, vector<32x128xf32>
    %89 = tpu.concatenate %88, %82, %75 in 0 : vector<32x128xf32>, vector<32x128xf32>, vector<32x128xf32> -> vector<96x128xf32>
    %c2 = arith.constant 2 : index
    %c0_46 = arith.constant 0 : index
    %c0_47 = arith.constant 0 : index
    %90 = vector.load %arg5[%c2, %c0_46, %c0_47] : memref<3x32x96xf32, #tpu.memory_space<vmem>>, vector<1x32x96xf32>
    %91 = vector.shape_cast %90 : vector<1x32x96xf32> to vector<32x96xf32>
    %cst_48 = arith.constant dense<0.000000e+00> : vector<32x128xf32>
    %92 = tpu.matmul %91, %89, %cst_48 {dimension_numbers = #tpu.dot_dimension_numbers<[1], [0], [0], [1], [0, 0, 1, 1], [], []>} : vector<32x96xf32>, vector<96x128xf32>, vector<32x128xf32> -> vector<32x128xf32>
    %c2_49 = arith.constant 2 : index
    %c0_50 = arith.constant 0 : index
    %c0_51 = arith.constant 0 : index
    %93 = vector.load %arg6[%c2_49, %c0_50, %c0_51] : memref<3x32x1xf32, #tpu.memory_space<vmem>>, vector<1x32x1xf32>
    %94 = vector.shape_cast %93 : vector<1x32x1xf32> to vector<32x1xf32>
    %95 = vector.broadcast %94 : vector<32x1xf32> to vector<32x128xf32>
    %96 = arith.addf %92, %95 : vector<32x128xf32>
    %cst_52 = arith.constant 0.000000e+00 : f32
    %97 = vector.broadcast %cst_52 : f32 to vector<32x128xf32>
    %98 = arith.maximumf %96, %97 : vector<32x128xf32>
    %c2_53 = arith.constant 2 : index
    %c0_54 = arith.constant 0 : index
    %c0_55 = arith.constant 0 : index
    %99 = vector.load %arg7[%c2_53, %c0_54, %c0_55] : memref<3x32x32xf32, #tpu.memory_space<vmem>>, vector<1x32x32xf32>
    %100 = vector.shape_cast %99 : vector<1x32x32xf32> to vector<32x32xf32>
    %cst_56 = arith.constant dense<0.000000e+00> : vector<32x128xf32>
    %101 = tpu.matmul %100, %98, %cst_56 {dimension_numbers = #tpu.dot_dimension_numbers<[1], [0], [0], [1], [0, 0, 1, 1], [], []>} : vector<32x32xf32>, vector<32x128xf32>, vector<32x128xf32> -> vector<32x128xf32>
    %c2_57 = arith.constant 2 : index
    %c0_58 = arith.constant 0 : index
    %c0_59 = arith.constant 0 : index
    %102 = vector.load %arg8[%c2_57, %c0_58, %c0_59] : memref<3x32x1xf32, #tpu.memory_space<vmem>>, vector<1x32x1xf32>
    %103 = vector.shape_cast %102 : vector<1x32x1xf32> to vector<32x1xf32>
    %104 = vector.broadcast %103 : vector<32x1xf32> to vector<32x128xf32>
    %105 = arith.addf %101, %104 : vector<32x128xf32>
    %106 = arith.addf %75, %105 : vector<32x128xf32>
    %107 = vector.broadcast %3 : vector<1x128xf32> to vector<32x128xf32>
    %108 = arith.mulf %106, %107 : vector<32x128xf32>
    %c0_60 = arith.constant 0 : index
    %c0_61 = arith.constant 0 : index
    %c0_62 = arith.constant 0 : index
    %109 = vector.load %arg11[%c0_60, %c0_61, %c0_62] : memref<1x32x128xf32, #tpu.memory_space<vmem>>, vector<1x32x128xf32>
    %110 = vector.shape_cast %109 : vector<1x32x128xf32> to vector<32x128xf32>
    %111 = vector.shape_cast %108 : vector<32x128xf32> to vector<1x32x128xf32>
    tpu.vector_store %arg11[%c0_60, %c0_61, %c0_62], %111 {strides = array<i32>} : memref<1x32x128xf32, #tpu.memory_space<vmem>>, vector<1x32x128xf32>,
    %112 = tpu.transpose %108, [1, 0] : vector<32x128xf32> -> vector<128x32xf32>
    %c0_63 = arith.constant 0 : index
    %c0_64 = arith.constant 0 : index
    %113 = vector.load %arg9[%c0_63, %c0_64] : memref<32x128xf32, #tpu.memory_space<vmem>>, vector<32x128xf32>
    %cst_65 = arith.constant dense<0.000000e+00> : vector<128x128xf32>
    %114 = tpu.matmul %112, %113, %cst_65 {dimension_numbers = #tpu.dot_dimension_numbers<[1], [0], [0], [1], [0, 0, 1, 1], [], []>} : vector<128x32xf32>, vector<32x128xf32>, vector<128x128xf32> -> vector<128x128xf32>
    %c0_66 = arith.constant 0 : index
    %c0_67 = arith.constant 0 : index
    %115 = vector.load %arg10[%c0_66, %c0_67] : memref<1x128xf32, #tpu.memory_space<vmem>>, vector<1x128xf32>
    %116 = vector.broadcast %115 : vector<1x128xf32> to vector<128x128xf32>
    %117 = arith.addf %114, %116 : vector<128x128xf32>
    %c0_68 = arith.constant 0 : index
    %c0_69 = arith.constant 0 : index
    %c0_70 = arith.constant 0 : index
    %118 = vector.load %arg12[%c0_68, %c0_69, %c0_70] : memref<1x128x128xf32, #tpu.memory_space<vmem>>, vector<1x128x128xf32>
    %119 = vector.shape_cast %118 : vector<1x128x128xf32> to vector<128x128xf32>
    %120 = vector.shape_cast %117 : vector<128x128xf32> to vector<1x128x128xf32>
    tpu.vector_store %arg12[%c0_68, %c0_69, %c0_70], %120 {strides = array<i32>} : memref<1x128x128xf32, #tpu.memory_space<vmem>>, vector<1x128x128xf32>,
    return
  }
  func.func @transform_0(%arg0: i32) -> (i32, i32, i32) {
    %c0_i32 = arith.constant 0 : i32
    %c0_i32_0 = arith.constant 0 : i32
    %c0_i32_1 = arith.constant 0 : i32
    return %arg0, %c0_i32, %c0_i32_0 : i32, i32, i32
  }
  func.func @transform_1(%arg0: i32) -> (i32, i32, i32) {
    %c0_i32 = arith.constant 0 : i32
    %c0_i32_0 = arith.constant 0 : i32
    %c0_i32_1 = arith.constant 0 : i32
    return %arg0, %c0_i32, %c0_i32_0 : i32, i32, i32
  }
  func.func @transform_2(%arg0: i32) -> (i32, i32) {
    %c0_i32 = arith.constant 0 : i32
    %c0_i32_0 = arith.constant 0 : i32
    %c0_i32_1 = arith.constant 0 : i32
    return %c0_i32, %c0_i32_0 : i32, i32
  }
  func.func @transform_3(%arg0: i32) -> (i32, i32) {
    %c0_i32 = arith.constant 0 : i32
    %c0_i32_0 = arith.constant 0 : i32
    %c0_i32_1 = arith.constant 0 : i32
    return %c0_i32, %c0_i32_0 : i32, i32
  }
  func.func @transform_4(%arg0: i32) -> (i32, i32, i32) {
    %c0_i32 = arith.constant 0 : i32
    %c0_i32_0 = arith.constant 0 : i32
    %c0_i32_1 = arith.constant 0 : i32
    %c0_i32_2 = arith.constant 0 : i32
    return %c0_i32, %c0_i32_0, %c0_i32_1 : i32, i32, i32
  }
  func.func @transform_5(%arg0: i32) -> (i32, i32, i32) {
    %c0_i32 = arith.constant 0 : i32
    %c0_i32_0 = arith.constant 0 : i32
    %c0_i32_1 = arith.constant 0 : i32
    %c0_i32_2 = arith.constant 0 : i32
    return %c0_i32, %c0_i32_0, %c0_i32_1 : i32, i32, i32
  }
  func.func @transform_6(%arg0: i32) -> (i32, i32, i32) {
    %c0_i32 = arith.constant 0 : i32
    %c0_i32_0 = arith.constant 0 : i32
    %c0_i32_1 = arith.constant 0 : i32
    %c0_i32_2 = arith.constant 0 : i32
    return %c0_i32, %c0_i32_0, %c0_i32_1 : i32, i32, i32
  }
  func.func @transform_7(%arg0: i32) -> (i32, i32, i32) {
    %c0_i32 = arith.constant 0 : i32
    %c0_i32_0 = arith.constant 0 : i32
    %c0_i32_1 = arith.constant 0 : i32
    %c0_i32_2 = arith.constant 0 : i32
    return %c0_i32, %c0_i32_0, %c0_i32_1 : i32, i32, i32
  }
  func.func @transform_8(%arg0: i32) -> (i32, i32) {
    %c0_i32 = arith.constant 0 : i32
    %c0_i32_0 = arith.constant 0 : i32
    %c0_i32_1 = arith.constant 0 : i32
    return %c0_i32, %c0_i32_0 : i32, i32
  }
  func.func @transform_9(%arg0: i32) -> (i32, i32) {
    %c0_i32 = arith.constant 0 : i32
    %c0_i32_0 = arith.constant 0 : i32
    %c0_i32_1 = arith.constant 0 : i32
    return %c0_i32, %c0_i32_0 : i32, i32
  }
  func.func @transform_10(%arg0: i32) -> (i32, i32, i32) {
    %c0_i32 = arith.constant 0 : i32
    %c0_i32_0 = arith.constant 0 : i32
    %c0_i32_1 = arith.constant 0 : i32
    return %arg0, %c0_i32, %c0_i32_0 : i32, i32, i32
  }
  func.func @transform_11(%arg0: i32) -> (i32, i32, i32) {
    %c0_i32 = arith.constant 0 : i32
    %c0_i32_0 = arith.constant 0 : i32
    %c0_i32_1 = arith.constant 0 : i32
    return %arg0, %c0_i32, %c0_i32_0 : i32, i32, i32
  }
}

</mosaic_0001>

<llo_original>
// kernel: tpu_custom_call.1
$region0: #{tpu_custom_call.1}
  #allocation0 [shape = 'u32[]', space=smem, size = 0x4, offset = 0x4, fixed_abs, tag = 'smem constant byte address 0x4 - core index']
  #allocation1 [shape = 'u32[144,128]{1,0:T(1,128)}', space=vmem, size = 0x12000, scoped, tag = 'internal scratch']
  %s0 = inlined_call_operand.vmem [shape: f32[2,16,128], index: 0, kind: input, shape index: {}]
  %s1 = inlined_call_operand.vmem [shape: f32[2,1,128], index: 1, kind: input, shape index: {}]
  %s2 = inlined_call_operand.vmem [shape: f32[32,16], index: 2, kind: input, shape index: {}]
  %s3 = inlined_call_operand.vmem [shape: f32[32,1], index: 3, kind: input, shape index: {}]
  %s4 = inlined_call_operand.vmem [shape: f32[3,32,96], index: 4, kind: input, shape index: {}]
  %s5 = inlined_call_operand.vmem [shape: f32[3,32,1], index: 5, kind: input, shape index: {}]
  %s6 = inlined_call_operand.vmem [shape: f32[3,32,32], index: 6, kind: input, shape index: {}]
  %s7 = inlined_call_operand.vmem [shape: f32[3,32,1], index: 7, kind: input, shape index: {}]
  %s8 = inlined_call_operand.vmem [shape: f32[32,128], index: 8, kind: input, shape index: {}]
  %s9 = inlined_call_operand.vmem [shape: f32[1,128], index: 9, kind: input, shape index: {}]
  %s10 = inlined_call_operand.hbm [shape: f32[2,32,128], index: 10, kind: output, shape index: {0}]
  %s11 = inlined_call_operand.hbm [shape: f32[2,128,128], index: 11, kind: output, shape index: {1}]
  %12 = xla_tuple %s10, %s11
  %s13 = sld [smem:[#allocation0]]
  $region81: #{tpu_custom_call.1} parent=0
    _
  %s15 = ssub.s32 1, %s13
  %s16 = scalar_select 0, %s15, %s13
  $region1: #{tpu_custom_call.1} parent=0
    #allocation2 [shape = 'u8[32768]{0}', space=vmem, size = 0x8000, scoped, tag = 'output window, operand 0']
    #allocation3 [shape = 's32[2]{0}', space=sflag, size = 0x8, scoped, tag = 'scoped memory for tpu_custom_call.1']
    #allocation4 [shape = 'u8[131072]{0}', space=vmem, size = 0x20000, scoped, tag = 'output window, operand 1']
    #allocation5 [shape = 's32[2]{0}', space=sflag, size = 0x8, scoped, tag = 'scoped memory for tpu_custom_call.1']
    %17 = vsyncpa [#allocation3], 0
    %s18 = scalar_lea.sflag [#allocation3], 1
    %19 = vsyncpa %s18, 0
    %20 = vsyncpa [#allocation5], 0
    %s21 = scalar_lea.sflag [#allocation5], 1
    %22 = vsyncpa %s21, 0
    loop: start=0, step=1, limit=4
    $region2: #{tpu_custom_call.1} parent=1 // loop_pre_header
      _
    $region3: #{tpu_custom_call.1} parent=1 // loop_header
      %s24 = sphi 0, %s28
      %p25 = scmp.ge.s32.totalorder %s24, 4
      %s34 = sphi 0, %s36
      %s37 = sphi 0, %s34
      %s38 = sphi 0, %s37
      %s54 = sphi 0, %s38
      %s60 = sphi 0, %s62
      %s63 = sphi 0, %s60
      %s64 = sphi 0, %s63
      %s80 = sphi 0, %s64
      %s84 = sphi 0, %s84
      %s86 = sphi 0, %s84
      %s87 = sphi 0, %s86
      %s101 = sphi 0, %s87
      %s105 = sphi 0, %s105
      %s107 = sphi 0, %s105
      %s108 = sphi 0, %s107
      %s122 = sphi 0, %s108
      %s126 = sphi 0, %s126
      %s128 = sphi 0, %s126
      %s129 = sphi 0, %s128
      %s143 = sphi 0, %s129
      %s147 = sphi 0, %s147
      %s149 = sphi 0, %s147
      %s150 = sphi 0, %s149
      %s164 = sphi 0, %s150
      %s168 = sphi 0, %s168
      %s170 = sphi 0, %s168
      %s171 = sphi 0, %s170
      %s185 = sphi 0, %s171
      %s189 = sphi 0, %s189
      %s191 = sphi 0, %s189
      %s192 = sphi 0, %s191
      %s206 = sphi 0, %s192
      %s210 = sphi 0, %s210
      %s212 = sphi 0, %s210
      %s213 = sphi 0, %s212
      %s227 = sphi 0, %s213
      %s231 = sphi 0, %s231
      %s233 = sphi 0, %s231
      %s234 = sphi 0, %s233
      %s248 = sphi 0, %s234
      %s254 = sphi 0, %s256
      %s257 = sphi 0, %s254
      %s258 = sphi 0, %s257
      %s274 = sphi 0, %s258
      %s280 = sphi 0, %s282
      %s283 = sphi 0, %s280
      %s284 = sphi 0, %s283
      %s300 = sphi 0, %s284
    $region4: #{tpu_custom_call.1} parent=1 // loop_header_branch
      %27 = sbr.rel (%p25) target = $region8
    $region5: #{tpu_custom_call.1} parent=1 // loop_body
      %s29 = ssub.s32 %s24, 1
      %s30 = ssub.s32 %s24, 2
      %s31 = sadd.s32 %s24, 1
      %s32 = ssub.s32 %s24, %s31
      %p33 = scmp.eq.s32.totalorder %s32, 0
      %s35 = sadd.s32 %s34, 1
      %s36 = scalar_select %p33, %s34, %s35
      %p39 = pneg %p33
      %p40 = scmp.eq.s32.totalorder %s24, 1
      %p41 = por %p39, %p40
      %p42 = scmp.ne.s32.totalorder %s34, %s37
      %p43 = scmp.eq.s32.totalorder %s24, 0
      %p44 = por %p42, %p43
      %p45 = scmp.ne.s32.totalorder %s34, %s37
      %p46 = scmp.eq.s32.totalorder %s29, 1
      %p47 = por %p45, %p46
      %p48 = scmp.ne.s32.totalorder %s37, %s38
      %p49 = scmp.eq.s32.totalorder %s29, 0
      %p50 = por %p48, %p49
      %p51 = scmp.ne.s32.totalorder %s37, %s38
      %p52 = scmp.eq.s32.totalorder %s30, 1
      %p53 = por %p51, %p52
      %p55 = scmp.ne.s32.totalorder %s38, %s54
      %p56 = scmp.eq.s32.totalorder %s30, 0
      %p57 = por %p55, %p56
      %s58 = ssub.s32 %s24, %s31
      %p59 = scmp.eq.s32.totalorder %s58, 0
      %s61 = sadd.s32 %s60, 1
      %s62 = scalar_select %p59, %s60, %s61
      %p65 = pneg %p59
      %p66 = scmp.eq.s32.totalorder %s24, 1
      %p67 = por %p65, %p66
      %p68 = scmp.ne.s32.totalorder %s60, %s63
      %p69 = scmp.eq.s32.totalorder %s24, 0
      %p70 = por %p68, %p69
      %p71 = scmp.ne.s32.totalorder %s60, %s63
      %p72 = scmp.eq.s32.totalorder %s29, 1
      %p73 = por %p71, %p72
      %p74 = scmp.ne.s32.totalorder %s63, %s64
      %p75 = scmp.eq.s32.totalorder %s29, 0
      %p76 = por %p74, %p75
      %p77 = scmp.ne.s32.totalorder %s63, %s64
      %p78 = scmp.eq.s32.totalorder %s30, 1
      %p79 = por %p77, %p78
      %p81 = scmp.ne.s32.totalorder %s64, %s80
      %p82 = scmp.eq.s32.totalorder %s30, 0
      %p83 = por %p81, %p82
      %s85 = sadd.s32 %s84, 1
      %p88 = scmp.eq.s32.totalorder %s24, 1
      %p89 = scmp.ne.s32.totalorder %s84, %s86
      %p90 = scmp.eq.s32.totalorder %s24, 0
      %p91 = por %p89, %p90
      %p92 = scmp.ne.s32.totalorder %s84, %s86
      %p93 = scmp.eq.s32.totalorder %s29, 1
      %p94 = por %p92, %p93
      %p95 = scmp.ne.s32.totalorder %s86, %s87
      %p96 = scmp.eq.s32.totalorder %s29, 0
      %p97 = por %p95, %p96
      %p98 = scmp.ne.s32.totalorder %s86, %s87
      %p99 = scmp.eq.s32.totalorder %s30, 1
      %p100 = por %p98, %p99
      %p102 = scmp.ne.s32.totalorder %s87, %s101
      %p103 = scmp.eq.s32.totalorder %s30, 0
      %p104 = por %p102, %p103
      %s106 = sadd.s32 %s105, 1
      %p109 = scmp.eq.s32.totalorder %s24, 1
      %p110 = scmp.ne.s32.totalorder %s105, %s107
      %p111 = scmp.eq.s32.totalorder %s24, 0
      %p112 = por %p110, %p111
      %p113 = scmp.ne.s32.totalorder %s105, %s107
      %p114 = scmp.eq.s32.totalorder %s29, 1
      %p115 = por %p113, %p114
      %p116 = scmp.ne.s32.totalorder %s107, %s108
      %p117 = scmp.eq.s32.totalorder %s29, 0
      %p118 = por %p116, %p117
      %p119 = scmp.ne.s32.totalorder %s107, %s108
      %p120 = scmp.eq.s32.totalorder %s30, 1
      %p121 = por %p119, %p120
      %p123 = scmp.ne.s32.totalorder %s108, %s122
      %p124 = scmp.eq.s32.totalorder %s30, 0
      %p125 = por %p123, %p124
      %s127 = sadd.s32 %s126, 1
      %p130 = scmp.eq.s32.totalorder %s24, 1
      %p131 = scmp.ne.s32.totalorder %s126, %s128
      %p132 = scmp.eq.s32.totalorder %s24, 0
      %p133 = por %p131, %p132
      %p134 = scmp.ne.s32.totalorder %s126, %s128
      %p135 = scmp.eq.s32.totalorder %s29, 1
      %p136 = por %p134, %p135
      %p137 = scmp.ne.s32.totalorder %s128, %s129
      %p138 = scmp.eq.s32.totalorder %s29, 0
      %p139 = por %p137, %p138
      %p140 = scmp.ne.s32.totalorder %s128, %s129
      %p141 = scmp.eq.s32.totalorder %s30, 1
      %p142 = por %p140, %p141
      %p144 = scmp.ne.s32.totalorder %s129, %s143
      %p145 = scmp.eq.s32.totalorder %s30, 0
      %p146 = por %p144, %p145
      %s148 = sadd.s32 %s147, 1
      %p151 = scmp.eq.s32.totalorder %s24, 1
      %p152 = scmp.ne.s32.totalorder %s147, %s149
      %p153 = scmp.eq.s32.totalorder %s24, 0
      %p154 = por %p152, %p153
      %p155 = scmp.ne.s32.totalorder %s147, %s149
      %p156 = scmp.eq.s32.totalorder %s29, 1
      %p157 = por %p155, %p156
      %p158 = scmp.ne.s32.totalorder %s149, %s150
      %p159 = scmp.eq.s32.totalorder %s29, 0
      %p160 = por %p158, %p159
      %p161 = scmp.ne.s32.totalorder %s149, %s150
      %p162 = scmp.eq.s32.totalorder %s30, 1
      %p163 = por %p161, %p162
      %p165 = scmp.ne.s32.totalorder %s150, %s164
      %p166 = scmp.eq.s32.totalorder %s30, 0
      %p167 = por %p165, %p166
      %s169 = sadd.s32 %s168, 1
      %p172 = scmp.eq.s32.totalorder %s24, 1
      %p173 = scmp.ne.s32.totalorder %s168, %s170
      %p174 = scmp.eq.s32.totalorder %s24, 0
      %p175 = por %p173, %p174
      %p176 = scmp.ne.s32.totalorder %s168, %s170
      %p177 = scmp.eq.s32.totalorder %s29, 1
      %p178 = por %p176, %p177
      %p179 = scmp.ne.s32.totalorder %s170, %s171
      %p180 = scmp.eq.s32.totalorder %s29, 0
      %p181 = por %p179, %p180
      %p182 = scmp.ne.s32.totalorder %s170, %s171
      %p183 = scmp.eq.s32.totalorder %s30, 1
      %p184 = por %p182, %p183
      %p186 = scmp.ne.s32.totalorder %s171, %s185
      %p187 = scmp.eq.s32.totalorder %s30, 0
      %p188 = por %p186, %p187
      %s190 = sadd.s32 %s189, 1
      %p193 = scmp.eq.s32.totalorder %s24, 1
      %p194 = scmp.ne.s32.totalorder %s189, %s191
      %p195 = scmp.eq.s32.totalorder %s24, 0
      %p196 = por %p194, %p195
      %p197 = scmp.ne.s32.totalorder %s189, %s191
      %p198 = scmp.eq.s32.totalorder %s29, 1
      %p199 = por %p197, %p198
      %p200 = scmp.ne.s32.totalorder %s191, %s192
      %p201 = scmp.eq.s32.totalorder %s29, 0
      %p202 = por %p200, %p201
      %p203 = scmp.ne.s32.totalorder %s191, %s192
      %p204 = scmp.eq.s32.totalorder %s30, 1
      %p205 = por %p203, %p204
      %p207 = scmp.ne.s32.totalorder %s192, %s206
      %p208 = scmp.eq.s32.totalorder %s30, 0
      %p209 = por %p207, %p208
      %s211 = sadd.s32 %s210, 1
      %p214 = scmp.eq.s32.totalorder %s24, 1
      %p215 = scmp.ne.s32.totalorder %s210, %s212
      %p216 = scmp.eq.s32.totalorder %s24, 0
      %p217 = por %p215, %p216
      %p218 = scmp.ne.s32.totalorder %s210, %s212
      %p219 = scmp.eq.s32.totalorder %s29, 1
      %p220 = por %p218, %p219
      %p221 = scmp.ne.s32.totalorder %s212, %s213
      %p222 = scmp.eq.s32.totalorder %s29, 0
      %p223 = por %p221, %p222
      %p224 = scmp.ne.s32.totalorder %s212, %s213
      %p225 = scmp.eq.s32.totalorder %s30, 1
      %p226 = por %p224, %p225
      %p228 = scmp.ne.s32.totalorder %s213, %s227
      %p229 = scmp.eq.s32.totalorder %s30, 0
      %p230 = por %p228, %p229
      %s232 = sadd.s32 %s231, 1
      %p235 = scmp.eq.s32.totalorder %s24, 1
      %p236 = scmp.ne.s32.totalorder %s231, %s233
      %p237 = scmp.eq.s32.totalorder %s24, 0
      %p238 = por %p236, %p237
      %p239 = scmp.ne.s32.totalorder %s231, %s233
      %p240 = scmp.eq.s32.totalorder %s29, 1
      %p241 = por %p239, %p240
      %p242 = scmp.ne.s32.totalorder %s233, %s234
      %p243 = scmp.eq.s32.totalorder %s29, 0
      %p244 = por %p242, %p243
      %p245 = scmp.ne.s32.totalorder %s233, %s234
      %p246 = scmp.eq.s32.totalorder %s30, 1
      %p247 = por %p245, %p246
      %p249 = scmp.ne.s32.totalorder %s234, %s248
      %p250 = scmp.eq.s32.totalorder %s30, 0
      %p251 = por %p249, %p250
      %s252 = ssub.s32 %s24, %s31
      %p253 = scmp.eq.s32.totalorder %s252, 0
      %s255 = sadd.s32 %s254, 1
      %s256 = scalar_select %p253, %s254, %s255
      %p259 = pneg %p253
      %p260 = scmp.eq.s32.totalorder %s24, 1
      %p261 = por %p259, %p260
      %p262 = scmp.ne.s32.totalorder %s254, %s257
      %p263 = scmp.eq.s32.totalorder %s24, 0
      %p264 = por %p262, %p263
      %p265 = scmp.ne.s32.totalorder %s254, %s257
      %p266 = scmp.eq.s32.totalorder %s29, 1
      %p267 = por %p265, %p266
      %p268 = scmp.ne.s32.totalorder %s257, %s258
      %p269 = scmp.eq.s32.totalorder %s29, 0
      %p270 = por %p268, %p269
      %p271 = scmp.ne.s32.totalorder %s257, %s258
      %p272 = scmp.eq.s32.totalorder %s30, 1
      %p273 = por %p271, %p272
      %p275 = scmp.ne.s32.totalorder %s258, %s274
      %p276 = scmp.eq.s32.totalorder %s30, 0
      %p277 = por %p275, %p276
      %s278 = ssub.s32 %s24, %s31
      %p279 = scmp.eq.s32.totalorder %s278, 0
      %s281 = sadd.s32 %s280, 1
      %s282 = scalar_select %p279, %s280, %s281
      %p285 = pneg %p279
      %p286 = scmp.eq.s32.totalorder %s24, 1
      %p287 = por %p285, %p286
      %p288 = scmp.ne.s32.totalorder %s280, %s283
      %p289 = scmp.eq.s32.totalorder %s24, 0
      %p290 = por %p288, %p289
      %p291 = scmp.ne.s32.totalorder %s280, %s283
      %p292 = scmp.eq.s32.totalorder %s29, 1
      %p293 = por %p291, %p292
      %p294 = scmp.ne.s32.totalorder %s283, %s284
      %p295 = scmp.eq.s32.totalorder %s29, 0
      %p296 = por %p294, %p295
      %p297 = scmp.ne.s32.totalorder %s283, %s284
      %p298 = scmp.eq.s32.totalorder %s30, 1
      %p299 = por %p297, %p298
      %p301 = scmp.ne.s32.totalorder %s284, %s300
      %p302 = scmp.eq.s32.totalorder %s30, 0
      %p303 = por %p301, %p302
      %p304 = scmp.le.s32.totalorder 1, %s24
      %p305 = scmp.lt.s32.totalorder %s24, 3
      %p306 = pnand %p304, %p305
      %p307 = pneg %p306
      // Predicated region
      $region9: #{tpu_custom_call.1} parent=5 // pred_check
        _
      $region10: #{tpu_custom_call.1} parent=5 // pred_check_branch
        %309 = sbr.rel (%p306) target = $region12
      $region11: #{tpu_custom_call.1} parent=5 // pred_region
        %s310 = ssub.s32 %s24, 1
        // Predicated region
        $region13: #{tpu_custom_call.1} parent=11 // pred_check
          %p311 = pneg %p97
        $region14: #{tpu_custom_call.1} parent=11 // pred_check_branch
          %313 = sbr.rel (%p311) target = $region16
        $region15: #{tpu_custom_call.1} parent=11 // pred_region
          _
        $region16: #{tpu_custom_call.1} parent=11 // pred_fallthru
          _
        // Predicated region
        $region17: #{tpu_custom_call.1} parent=11 // pred_check
          %p314 = pneg %p118
        $region18: #{tpu_custom_call.1} parent=11 // pred_check_branch
          %316 = sbr.rel (%p314) target = $region20
        $region19: #{tpu_custom_call.1} parent=11 // pred_region
          _
        $region20: #{tpu_custom_call.1} parent=11 // pred_fallthru
          _
        // Predicated region
        $region21: #{tpu_custom_call.1} parent=11 // pred_check
          %p317 = pneg %p139
        $region22: #{tpu_custom_call.1} parent=11 // pred_check_branch
          %319 = sbr.rel (%p317) target = $region24
        $region23: #{tpu_custom_call.1} parent=11 // pred_region
          _
        $region24: #{tpu_custom_call.1} parent=11 // pred_fallthru
          _
        // Predicated region
        $region25: #{tpu_custom_call.1} parent=11 // pred_check
          %p320 = pneg %p160
        $region26: #{tpu_custom_call.1} parent=11 // pred_check_branch
          %322 = sbr.rel (%p320) target = $region28
        $region27: #{tpu_custom_call.1} parent=11 // pred_region
          _
        $region28: #{tpu_custom_call.1} parent=11 // pred_fallthru
          _
        // Predicated region
        $region29: #{tpu_custom_call.1} parent=11 // pred_check
          %p323 = pneg %p181
        $region30: #{tpu_custom_call.1} parent=11 // pred_check_branch
          %325 = sbr.rel (%p323) target = $region32
        $region31: #{tpu_custom_call.1} parent=11 // pred_region
          _
        $region32: #{tpu_custom_call.1} parent=11 // pred_fallthru
          _
        // Predicated region
        $region33: #{tpu_custom_call.1} parent=11 // pred_check
          %p326 = pneg %p202
        $region34: #{tpu_custom_call.1} parent=11 // pred_check_branch
          %328 = sbr.rel (%p326) target = $region36
        $region35: #{tpu_custom_call.1} parent=11 // pred_region
          _
        $region36: #{tpu_custom_call.1} parent=11 // pred_fallthru
          _
        // Predicated region
        $region37: #{tpu_custom_call.1} parent=11 // pred_check
          %p329 = pneg %p223
        $region38: #{tpu_custom_call.1} parent=11 // pred_check_branch
          %331 = sbr.rel (%p329) target = $region40
        $region39: #{tpu_custom_call.1} parent=11 // pred_region
          _
        $region40: #{tpu_custom_call.1} parent=11 // pred_fallthru
          _
        // Predicated region
        $region41: #{tpu_custom_call.1} parent=11 // pred_check
          %p332 = pneg %p244
        $region42: #{tpu_custom_call.1} parent=11 // pred_check_branch
          %334 = sbr.rel (%p332) target = $region44
        $region43: #{tpu_custom_call.1} parent=11 // pred_region
          _
        $region44: #{tpu_custom_call.1} parent=11 // pred_fallthru
          _
      $region12: #{tpu_custom_call.1} parent=5 // pred_fallthru
        _
      %p335 = scmp.lt.s32.totalorder %s24, 2
      // Predicated region
      $region45: #{tpu_custom_call.1} parent=5 // pred_check
        %p336 = pneg %p335
      $region46: #{tpu_custom_call.1} parent=5 // pred_check_branch
        %338 = sbr.rel (%p336) target = $region48
      $region47: #{tpu_custom_call.1} parent=5 // pred_region
        // Predicated region
        $region49: #{tpu_custom_call.1} parent=47 // pred_check
          %p339 = pneg %p44
        $region50: #{tpu_custom_call.1} parent=47 // pred_check_branch
          %341 = sbr.rel (%p339) target = $region52
        $region51: #{tpu_custom_call.1} parent=47 // pred_region
          %p342 = scmp.lt.s32.totalorder %s24, 1
          %s343 = scalar_select %p342, %s24, 1
          %s344 = smul.addr %s343, 2
          %s345 = smul.addr %s344, 8
          %s346 = scalar_lea.vmem %s0, %s345
        $region52: #{tpu_custom_call.1} parent=47 // pred_fallthru
          _
        // Predicated region
        $region53: #{tpu_custom_call.1} parent=47 // pred_check
          %p347 = pneg %p70
        $region54: #{tpu_custom_call.1} parent=47 // pred_check_branch
          %349 = sbr.rel (%p347) target = $region56
        $region55: #{tpu_custom_call.1} parent=47 // pred_region
          %p350 = scmp.lt.s32.totalorder %s24, 1
          %s351 = scalar_select %p350, %s24, 1
          %s352 = scalar_lea.vmem %s1, %s351
        $region56: #{tpu_custom_call.1} parent=47 // pred_fallthru
          _
      $region48: #{tpu_custom_call.1} parent=5 // pred_fallthru
        _
      %p353 = scmp.le.s32.totalorder 1, %s24
      %p354 = scmp.lt.s32.totalorder %s24, 3
      %p355 = pnand %p353, %p354
      %p356 = pneg %p355
      // Predicated region
      $region57: #{tpu_custom_call.1} parent=5 // pred_check
        _
      $region58: #{tpu_custom_call.1} parent=5 // pred_check_branch
        %358 = sbr.rel (%p355) target = $region60
      $region59: #{tpu_custom_call.1} parent=5 // pred_region
        %s359 = ssub.s32 %s24, 1
        %p360 = scmp.lt.s32.totalorder %s29, 1
        %s361 = scalar_select %p360, %s29, 1
        %s362 = smul.addr %s361, 2
        %s363 = smul.addr %s362, 8
        %s364 = scalar_lea.vmem %s0, %s363
        %p365 = pneg %p50
        %p366 = pneg %p47
        %p367 = scmp.lt.s32.totalorder %s29, 1
        %s368 = scalar_select %p367, %s29, 1
        %s369 = scalar_lea.vmem %s1, %s368
        %p370 = pneg %p76
        %p371 = pneg %p73
        %p372 = pneg %p97
        %p373 = pneg %p94
        %p374 = pneg %p118
        %p375 = pneg %p115
        %p376 = pneg %p139
        %p377 = pneg %p136
        %p378 = pneg %p160
        %p379 = pneg %p157
        %p380 = pneg %p181
        %p381 = pneg %p178
        %p382 = pneg %p202
        %p383 = pneg %p199
        %p384 = pneg %p223
        %p385 = pneg %p220
        %p386 = pneg %p244
        %p387 = pneg %p241
        %p388 = pneg %p270
        %p389 = pneg %p267
        %s390 = sand.u32 %s257, 1
        %s391 = scalar_lea.sflag [#allocation3], %s390
        %s392 = sand.u32 %s257, 1
        %s393 = smul.addr %s392, 32
        %s394 = scalar_lea.vmem [#allocation2], %s393
        %p395 = pneg %p296
        %p396 = pneg %p293
        %s397 = sand.u32 %s283, 1
        %s398 = scalar_lea.sflag [#allocation5], %s397
        %s399 = sand.u32 %s283, 1
        %s400 = smul.addr %s399, 128
        %s401 = scalar_lea.vmem [#allocation4], %s400
        %p402 = scmp.lt.s32.totalorder %s29, 1
        %s403 = scalar_select %p402, %s29, 1
        %s404 = smul.addr %s403, 2
        %s405 = smul.addr %s404, 8
        %s406 = scalar_lea.vmem %s0, %s405
        %p407 = scmp.lt.s32.totalorder %s29, 1
        %s408 = scalar_select %p407, %s29, 1
        %s409 = scalar_lea.vmem %s1, %s408
        %v410 = vld [vmem:[%s406] sm:$0xff]
        %v411 = vld [vmem:[%s406 + $0x8] sm:$0xff]
        %v412 = vld [vmem:[%s409] sm:$0x1]
        %v413 = vld [vmem:[%s2] sm:$0xff]
        %v414 = vld [vmem:[%s2 + $0x8] sm:$0xff]
        %v415 = vld [vmem:[%s2 + $0x10] sm:$0xff]
        %v416 = vld [vmem:[%s2 + $0x18] sm:$0xff]
        %v417 = vld [vmem:[%s3] sm:$0xff]
        %v418 = vld [vmem:[%s3 + $0x8] sm:$0xff]
        %v419 = vld [vmem:[%s3 + $0x10] sm:$0xff]
        %v420 = vld [vmem:[%s3 + $0x18] sm:$0xff]
        %422 = vset.pattern.permute.xlu0 0
        %423 = vperm.xlu0 %422, %v417
        %v424 = vpop.permute.xlu0 %423
        %427 = vset.pattern.permute.xlu0 0
        %428 = vperm.xlu0 %427, %v418
        %v429 = vpop.permute.xlu0 %428
        %432 = vset.pattern.permute.xlu0 0
        %433 = vperm.xlu0 %432, %v419
        %v434 = vpop.permute.xlu0 %433
        %437 = vset.pattern.permute.xlu0 0
        %438 = vperm.xlu0 %437, %v420
        %v439 = vpop.permute.xlu0 %438
        %vm441 = vcmask 130048
        %v443 = vsel %vm441, %v413, 0
        %v446 = vsel %vm441, %v414, 0
        %v449 = vsel %vm441, %v415, 0
        %v452 = vsel %vm441, %v416, 0
        %454 = vmatprep.subr.mxu0 0.0
        %455 = vmatpush1.msra.mxu0 %v410
        %456 = vmatprep.subr.mxu0 0.0
        %457 = vmatpush1.msra.mxu0 %v411
        %458 = vmatprep.subr.mxu0 0.0
        %459 = vmatpush1.msra.mxu0 0.0
        %460 = vmatprep.subr.mxu0 0.0
        %461 = vmatpush1.msra.mxu0 0.0
        %462 = vmatprep.subr.mxu0 0.0
        %463 = vmatpush1.msra.mxu0 0.0
        %464 = vmatprep.subr.mxu0 0.0
        %465 = vmatpush1.msra.mxu0 0.0
        %466 = vmatprep.subr.mxu0 0.0
        %467 = vmatpush1.msra.mxu0 0.0
        %468 = vmatprep.subr.mxu0 0.0
        %469 = vmatpush1.msra.mxu0 0.0
        %470 = vmatprep.subr.mxu0 0.0
        %471 = vmatpush1.msra.mxu0 0.0
        %472 = vmatprep.subr.mxu0 0.0
        %473 = vmatpush1.msra.mxu0 0.0
        %474 = vmatprep.subr.mxu0 0.0
        %475 = vmatpush1.msra.mxu0 0.0
        %476 = vmatprep.subr.mxu0 0.0
        %477 = vmatpush1.msra.mxu0 0.0
        %478 = vmatprep.subr.mxu0 0.0
        %479 = vmatpush1.msra.mxu0 0.0
        %480 = vmatprep.subr.mxu0 0.0
        %481 = vmatpush1.msra.mxu0 0.0
        %482 = vmatprep.subr.mxu0 0.0
        %483 = vmatpush1.msra.mxu0 0.0
        %484 = vmatprep.subr.mxu0 0.0
        %485 = vmatpush1.msra.mxu0 0.0
        %486 = vmatprep.subr.mxu0 0.0
        %487 = vmatpush1.msra.mxu0 0.0
        %488 = vmatprep.subr.mxu0 0.0
        %489 = vmatpush1.msra.mxu0 0.0
        %490 = vmatprep.subr.mxu0 0.0
        %491 = vmatpush1.msra.mxu0 0.0
        %492 = vmatprep.subr.mxu0 0.0
        %493 = vmatpush1.msra.mxu0 0.0
        %494 = vmatprep.subr.mxu0 0.0
        %495 = vmatpush1.msra.mxu0 0.0
        %496 = vmatprep.subr.mxu0 0.0
        %497 = vmatpush1.msra.mxu0 0.0
        %498 = vmatprep.subr.mxu0 0.0
        %499 = vmatpush1.msra.mxu0 0.0
        %500 = vmatprep.subr.mxu0 0.0
        %501 = vmatpush1.msra.mxu0 0.0
        %502 = vmatprep.subr.mxu0 0.0
        %503 = vmatpush1.msra.mxu0 0.0
        %504 = vmatprep.subr.mxu0 0.0
        %505 = vmatpush1.msra.mxu0 0.0
        %506 = vmatprep.subr.mxu0 0.0
        %507 = vmatpush1.msra.mxu0 0.0
        %508 = vmatprep.subr.mxu0 0.0
        %509 = vmatpush1.msra.mxu0 0.0
        %510 = vmatprep.subr.mxu0 0.0
        %511 = vmatpush1.msra.mxu0 0.0
        %512 = vmatprep.subr.mxu0 0.0
        %513 = vmatpush1.msra.mxu0 0.0
        %514 = vmatprep.subr.mxu0 0.0
        %515 = vmatpush1.msra.mxu0 0.0
        %516 = vmatprep.subr.mxu0 0.0
        %517 = vmatpush1.msra.mxu0 0.0
        %518 = vmatprep.mubr.f32.mxu0 0.0
        %519 = vmatmul.mubr.f32.gmra.mrb[0].mxu0 %v443
        %v520 = vpop.f32.mrb[0].mxu0
        %v521 = vadd.f32 %v424, %v520
        %v522 = vpop.f32.mrb[0].mxu0
        %523 = vmatprep.mubr.f32.mxu0 0.0
        %524 = vmatmul.mubr.f32.gmra.mrb[0].mxu0 %v446
        %v525 = vpop.f32.mrb[0].mxu0
        %v526 = vadd.f32 %v429, %v525
        %v527 = vpop.f32.mrb[0].mxu0
        %528 = vmatprep.mubr.f32.mxu0 0.0
        %529 = vmatmul.mubr.f32.gmra.mrb[0].mxu0 %v449
        %v530 = vpop.f32.mrb[0].mxu0
        %v531 = vadd.f32 %v434, %v530
        %v532 = vpop.f32.mrb[0].mxu0
        %533 = vmatprep.mubr.f32.mxu0 0.0
        %534 = vmatmul.mubr.f32.gmra.mrb[0].mxu0 %v452
        %v535 = vpop.f32.mrb[0].mxu0
        %v536 = vadd.f32 %v439, %v535
        %v537 = vpop.f32.mrb[0].mxu0
        %538 = vdwg.mxu0
        %v539 = vlaneseq
        %v540 = vand.u32 %v539, 127
        %vm541 = vcmp.lt.s32.totalorder %v540, 1
        %542 = vrot.lane.b32.xlu0 %v521, 1
        %v543 = vpop.permute.xlu0 %542
        %544 = vrot.lane.b32.xlu0 %v526, 1
        %v545 = vpop.permute.xlu0 %544
        %546 = vrot.lane.b32.xlu0 %v531, 1
        %v547 = vpop.permute.xlu0 %546
        %548 = vrot.lane.b32.xlu0 %v536, 1
        %v549 = vpop.permute.xlu0 %548
        %551 = vset.pattern.permute.xlu0 0
        %552 = vperm.xlu0 %551, %v521
        %v553 = vpop.permute.xlu0 %552
        %556 = vset.pattern.permute.xlu0 0
        %557 = vperm.xlu0 %556, %v526
        %v558 = vpop.permute.xlu0 %557
        %561 = vset.pattern.permute.xlu0 0
        %562 = vperm.xlu0 %561, %v531
        %v563 = vpop.permute.xlu0 %562
        %566 = vset.pattern.permute.xlu0 0
        %567 = vperm.xlu0 %566, %v536
        %v568 = vpop.permute.xlu0 %567
        %v570 = vsel %vm541, %v553, %v543
        %v571 = vsel %vm541, %v558, %v545
        %v572 = vsel %vm541, %v563, %v547
        %v573 = vsel %vm541, %v568, %v549
        %vm574 = vcmp.lt.s32.totalorder %v540, 2
        %575 = vrot.lane.b32.xlu0 %v521, 2
        %v576 = vpop.permute.xlu0 %575
        %577 = vrot.lane.b32.xlu0 %v526, 2
        %v578 = vpop.permute.xlu0 %577
        %579 = vrot.lane.b32.xlu0 %v531, 2
        %v580 = vpop.permute.xlu0 %579
        %581 = vrot.lane.b32.xlu0 %v536, 2
        %v582 = vpop.permute.xlu0 %581
        %v583 = vsel %vm574, %v553, %v576
        %v584 = vsel %vm574, %v558, %v578
        %v585 = vsel %vm574, %v563, %v580
        %v586 = vsel %vm574, %v568, %v582
        %v587 = vld [vmem:[%s4] sm:$0xff]
        %v588 = vld [vmem:[%s4 + $0x8] sm:$0xff]
        %v589 = vld [vmem:[%s4 + $0x10] sm:$0xff]
        %v590 = vld [vmem:[%s4 + $0x18] sm:$0xff]
        %v591 = vld [vmem:[%s5] sm:$0xff]
        %v592 = vld [vmem:[%s5 + $0x8] sm:$0xff]
        %v593 = vld [vmem:[%s5 + $0x10] sm:$0xff]
        %v594 = vld [vmem:[%s5 + $0x18] sm:$0xff]
        %596 = vset.pattern.permute.xlu0 0
        %597 = vperm.xlu0 %596, %v591
        %v598 = vpop.permute.xlu0 %597
        %601 = vset.pattern.permute.xlu0 0
        %602 = vperm.xlu0 %601, %v592
        %v603 = vpop.permute.xlu0 %602
        %606 = vset.pattern.permute.xlu0 0
        %607 = vperm.xlu0 %606, %v593
        %v608 = vpop.permute.xlu0 %607
        %611 = vset.pattern.permute.xlu0 0
        %612 = vperm.xlu0 %611, %v594
        %v613 = vpop.permute.xlu0 %612
        %vm615 = vcmask 785408
        %v617 = vsel %vm615, %v587, 0
        %v620 = vsel %vm615, %v588, 0
        %v623 = vsel %vm615, %v589, 0
        %v626 = vsel %vm615, %v590, 0
        %628 = vmatprep.subr.mxu0 0.0
        %629 = vmatpush1.msra.mxu0 %v583
        %630 = vmatprep.subr.mxu0 0.0
        %631 = vmatpush1.msra.mxu0 %v584
        %632 = vmatprep.subr.mxu0 0.0
        %633 = vmatpush1.msra.mxu0 %v585
        %634 = vmatprep.subr.mxu0 0.0
        %635 = vmatpush1.msra.mxu0 %v586
        %636 = vmatprep.subr.mxu0 0.0
        %637 = vmatpush1.msra.mxu0 %v570
        %638 = vmatprep.subr.mxu0 0.0
        %639 = vmatpush1.msra.mxu0 %v571
        %640 = vmatprep.subr.mxu0 0.0
        %641 = vmatpush1.msra.mxu0 %v572
        %642 = vmatprep.subr.mxu0 0.0
        %643 = vmatpush1.msra.mxu0 %v573
        %644 = vmatprep.subr.mxu0 0.0
        %645 = vmatpush1.msra.mxu0 %v521
        %646 = vmatprep.subr.mxu0 0.0
        %647 = vmatpush1.msra.mxu0 %v526
        %648 = vmatprep.subr.mxu0 0.0
        %649 = vmatpush1.msra.mxu0 %v531
        %650 = vmatprep.subr.mxu0 0.0
        %651 = vmatpush1.msra.mxu0 %v536
        %652 = vmatprep.subr.mxu0 0.0
        %653 = vmatpush1.msra.mxu0 0.0
        %654 = vmatprep.subr.mxu0 0.0
        %655 = vmatpush1.msra.mxu0 0.0
        %656 = vmatprep.subr.mxu0 0.0
        %657 = vmatpush1.msra.mxu0 0.0
        %658 = vmatprep.subr.mxu0 0.0
        %659 = vmatpush1.msra.mxu0 0.0
        %660 = vmatprep.subr.mxu0 0.0
        %661 = vmatpush1.msra.mxu0 0.0
        %662 = vmatprep.subr.mxu0 0.0
        %663 = vmatpush1.msra.mxu0 0.0
        %664 = vmatprep.subr.mxu0 0.0
        %665 = vmatpush1.msra.mxu0 0.0
        %666 = vmatprep.subr.mxu0 0.0
        %667 = vmatpush1.msra.mxu0 0.0
        %668 = vmatprep.subr.mxu0 0.0
        %669 = vmatpush1.msra.mxu0 0.0
        %670 = vmatprep.subr.mxu0 0.0
        %671 = vmatpush1.msra.mxu0 0.0
        %672 = vmatprep.subr.mxu0 0.0
        %673 = vmatpush1.msra.mxu0 0.0
        %674 = vmatprep.subr.mxu0 0.0
        %675 = vmatpush1.msra.mxu0 0.0
        %676 = vmatprep.subr.mxu0 0.0
        %677 = vmatpush1.msra.mxu0 0.0
        %678 = vmatprep.subr.mxu0 0.0
        %679 = vmatpush1.msra.mxu0 0.0
        %680 = vmatprep.subr.mxu0 0.0
        %681 = vmatpush1.msra.mxu0 0.0
        %682 = vmatprep.subr.mxu0 0.0
        %683 = vmatpush1.msra.mxu0 0.0
        %684 = vmatprep.subr.mxu0 0.0
        %685 = vmatpush1.msra.mxu0 0.0
        %686 = vmatprep.subr.mxu0 0.0
        %687 = vmatpush1.msra.mxu0 0.0
        %688 = vmatprep.subr.mxu0 0.0
        %689 = vmatpush1.msra.mxu0 0.0
        %690 = vmatprep.subr.mxu0 0.0
        %691 = vmatpush1.msra.mxu0 0.0
        %692 = vmatprep.mubr.f32.mxu0 0.0
        %693 = vmatmul.mubr.f32.gmra.mrb[0].mxu0 %v617
        %v694 = vpop.f32.mrb[0].mxu0
        %v695 = vadd.f32 %v598, %v694
        %v696 = vpop.f32.mrb[0].mxu0
        %697 = vmatprep.mubr.f32.mxu0 0.0
        %698 = vmatmul.mubr.f32.gmra.mrb[0].mxu0 %v620
        %v699 = vpop.f32.mrb[0].mxu0
        %v700 = vadd.f32 %v603, %v699
        %v701 = vpop.f32.mrb[0].mxu0
        %702 = vmatprep.mubr.f32.mxu0 0.0
        %703 = vmatmul.mubr.f32.gmra.mrb[0].mxu0 %v623
        %v704 = vpop.f32.mrb[0].mxu0
        %v705 = vadd.f32 %v608, %v704
        %v706 = vpop.f32.mrb[0].mxu0
        %707 = vmatprep.mubr.f32.mxu0 0.0
        %708 = vmatmul.mubr.f32.gmra.mrb[0].mxu0 %v626
        %v709 = vpop.f32.mrb[0].mxu0
        %v710 = vadd.f32 %v613, %v709
        %v711 = vpop.f32.mrb[0].mxu0
        %712 = vdwg.mxu0
        %v713 = vmax.f32 %v695, 0.0
        %v714 = vmax.f32 %v700, 0.0
        %v715 = vmax.f32 %v705, 0.0
        %v716 = vmax.f32 %v710, 0.0
        %v717 = vld [vmem:[%s6] sm:$0xff]
        %v718 = vld [vmem:[%s6 + $0x8] sm:$0xff]
        %v719 = vld [vmem:[%s6 + $0x10] sm:$0xff]
        %v720 = vld [vmem:[%s6 + $0x18] sm:$0xff]
        %v721 = vld [vmem:[%s7] sm:$0xff]
        %v722 = vld [vmem:[%s7 + $0x8] sm:$0xff]
        %v723 = vld [vmem:[%s7 + $0x10] sm:$0xff]
        %v724 = vld [vmem:[%s7 + $0x18] sm:$0xff]
        %726 = vset.pattern.permute.xlu0 0
        %727 = vperm.xlu0 %726, %v721
        %v728 = vpop.permute.xlu0 %727
        %731 = vset.pattern.permute.xlu0 0
        %732 = vperm.xlu0 %731, %v722
        %v733 = vpop.permute.xlu0 %732
        %736 = vset.pattern.permute.xlu0 0
        %737 = vperm.xlu0 %736, %v723
        %v738 = vpop.permute.xlu0 %737
        %741 = vset.pattern.permute.xlu0 0
        %742 = vperm.xlu0 %741, %v724
        %v743 = vpop.permute.xlu0 %742
        %vm745 = vcmask 261120
        %v747 = vsel %vm745, %v717, 0
        %v750 = vsel %vm745, %v718, 0
        %v753 = vsel %vm745, %v719, 0
        %v756 = vsel %vm745, %v720, 0
        %758 = vmatprep.subr.mxu0 0.0
        %759 = vmatpush1.msra.mxu0 %v713
        %760 = vmatprep.subr.mxu0 0.0
        %761 = vmatpush1.msra.mxu0 %v714
        %762 = vmatprep.subr.mxu0 0.0
        %763 = vmatpush1.msra.mxu0 %v715
        %764 = vmatprep.subr.mxu0 0.0
        %765 = vmatpush1.msra.mxu0 %v716
        %766 = vmatprep.subr.mxu0 0.0
        %767 = vmatpush1.msra.mxu0 0.0
        %768 = vmatprep.subr.mxu0 0.0
        %769 = vmatpush1.msra.mxu0 0.0
        %770 = vmatprep.subr.mxu0 0.0
        %771 = vmatpush1.msra.mxu0 0.0
        %772 = vmatprep.subr.mxu0 0.0
        %773 = vmatpush1.msra.mxu0 0.0
        %774 = vmatprep.subr.mxu0 0.0
        %775 = vmatpush1.msra.mxu0 0.0
        %776 = vmatprep.subr.mxu0 0.0
        %777 = vmatpush1.msra.mxu0 0.0
        %778 = vmatprep.subr.mxu0 0.0
        %779 = vmatpush1.msra.mxu0 0.0
        %780 = vmatprep.subr.mxu0 0.0
        %781 = vmatpush1.msra.mxu0 0.0
        %782 = vmatprep.subr.mxu0 0.0
        %783 = vmatpush1.msra.mxu0 0.0
        %784 = vmatprep.subr.mxu0 0.0
        %785 = vmatpush1.msra.mxu0 0.0
        %786 = vmatprep.subr.mxu0 0.0
        %787 = vmatpush1.msra.mxu0 0.0
        %788 = vmatprep.subr.mxu0 0.0
        %789 = vmatpush1.msra.mxu0 0.0
        %790 = vmatprep.subr.mxu0 0.0
        %791 = vmatpush1.msra.mxu0 0.0
        %792 = vmatprep.subr.mxu0 0.0
        %793 = vmatpush1.msra.mxu0 0.0
        %794 = vmatprep.subr.mxu0 0.0
        %795 = vmatpush1.msra.mxu0 0.0
        %796 = vmatprep.subr.mxu0 0.0
        %797 = vmatpush1.msra.mxu0 0.0
        %798 = vmatprep.subr.mxu0 0.0
        %799 = vmatpush1.msra.mxu0 0.0
        %800 = vmatprep.subr.mxu0 0.0
        %801 = vmatpush1.msra.mxu0 0.0
        %802 = vmatprep.subr.mxu0 0.0
        %803 = vmatpush1.msra.mxu0 0.0
        %804 = vmatprep.subr.mxu0 0.0
        %805 = vmatpush1.msra.mxu0 0.0
        %806 = vmatprep.subr.mxu0 0.0
        %807 = vmatpush1.msra.mxu0 0.0
        %808 = vmatprep.subr.mxu0 0.0
        %809 = vmatpush1.msra.mxu0 0.0
        %810 = vmatprep.subr.mxu0 0.0
        %811 = vmatpush1.msra.mxu0 0.0
        %812 = vmatprep.subr.mxu0 0.0
        %813 = vmatpush1.msra.mxu0 0.0
        %814 = vmatprep.subr.mxu0 0.0
        %815 = vmatpush1.msra.mxu0 0.0
        %816 = vmatprep.subr.mxu0 0.0
        %817 = vmatpush1.msra.mxu0 0.0
        %818 = vmatprep.subr.mxu0 0.0
        %819 = vmatpush1.msra.mxu0 0.0
        %820 = vmatprep.subr.mxu0 0.0
        %821 = vmatpush1.msra.mxu0 0.0
        %822 = vmatprep.mubr.f32.mxu0 0.0
        %823 = vmatmul.mubr.f32.gmra.mrb[0].mxu0 %v747
        %v824 = vpop.f32.mrb[0].mxu0
        %v825 = vadd.f32 %v728, %v824
        %v826 = vpop.f32.mrb[0].mxu0
        %827 = vmatprep.mubr.f32.mxu0 0.0
        %828 = vmatmul.mubr.f32.gmra.mrb[0].mxu0 %v750
        %v829 = vpop.f32.mrb[0].mxu0
        %v830 = vadd.f32 %v733, %v829
        %v831 = vpop.f32.mrb[0].mxu0
        %832 = vmatprep.mubr.f32.mxu0 0.0
        %833 = vmatmul.mubr.f32.gmra.mrb[0].mxu0 %v753
        %v834 = vpop.f32.mrb[0].mxu0
        %v835 = vadd.f32 %v738, %v834
        %v836 = vpop.f32.mrb[0].mxu0
        %837 = vmatprep.mubr.f32.mxu0 0.0
        %838 = vmatmul.mubr.f32.gmra.mrb[0].mxu0 %v756
        %v839 = vpop.f32.mrb[0].mxu0
        %v840 = vadd.f32 %v743, %v839
        %v841 = vpop.f32.mrb[0].mxu0
        %842 = vdwg.mxu0
        %v843 = vadd.f32 %v521, %v825
        %v844 = vadd.f32 %v526, %v830
        %v845 = vadd.f32 %v531, %v835
        %v846 = vadd.f32 %v536, %v840
        %v848 = vlaneseq
        %v849 = vshrl.u32 %v848, 7
        %v850 = vsub.s32 0, %v849
        %v851 = vrot.slane %v412, %v850
        %v853 = vmul.f32 %v843, %v851
        %v854 = vmul.f32 %v844, %v851
        %v855 = vmul.f32 %v845, %v851
        %v856 = vmul.f32 %v846, %v851
        %857 = vrot.lane.b32.xlu0 %v853, 2
        %v858 = vpop.permute.xlu0 %857
        %859 = vrot.lane.b32.xlu0 %v854, 2
        %v860 = vpop.permute.xlu0 %859
        %861 = vrot.lane.b32.xlu0 %v855, 2
        %v862 = vpop.permute.xlu0 %861
        %863 = vrot.lane.b32.xlu0 %v856, 2
        %v864 = vpop.permute.xlu0 %863
        %866 = vset.pattern.permute.xlu0 0
        %867 = vperm.xlu0 %866, %v853
        %v868 = vpop.permute.xlu0 %867
        %871 = vset.pattern.permute.xlu0 0
        %872 = vperm.xlu0 %871, %v854
        %v873 = vpop.permute.xlu0 %872
        %876 = vset.pattern.permute.xlu0 0
        %877 = vperm.xlu0 %876, %v855
        %v878 = vpop.permute.xlu0 %877
        %881 = vset.pattern.permute.xlu0 0
        %882 = vperm.xlu0 %881, %v856
        %v883 = vpop.permute.xlu0 %882
        %v885 = vsel %vm574, %v868, %v858
        %v886 = vsel %vm574, %v873, %v860
        %v887 = vsel %vm574, %v878, %v862
        %v888 = vsel %vm574, %v883, %v864
        %vm889 = vcmp.lt.s32.totalorder %v540, 4
        %890 = vrot.lane.b32.xlu0 %v853, 4
        %v891 = vpop.permute.xlu0 %890
        %892 = vrot.lane.b32.xlu0 %v854, 4
        %v893 = vpop.permute.xlu0 %892
        %894 = vrot.lane.b32.xlu0 %v855, 4
        %v895 = vpop.permute.xlu0 %894
        %896 = vrot.lane.b32.xlu0 %v856, 4
        %v897 = vpop.permute.xlu0 %896
        %v898 = vsel %vm889, %v868, %v891
        %v899 = vsel %vm889, %v873, %v893
        %v900 = vsel %vm889, %v878, %v895
        %v901 = vsel %vm889, %v883, %v897
        %s902 = scalar_lea.vmem %s4, 32
        %v903 = vld [vmem:[%s902] sm:$0xff]
        %v904 = vld [vmem:[%s902 + $0x8] sm:$0xff]
        %v905 = vld [vmem:[%s902 + $0x10] sm:$0xff]
        %v906 = vld [vmem:[%s902 + $0x18] sm:$0xff]
        %s907 = scalar_lea.vmem %s5, 32
        %v908 = vld [vmem:[%s907] sm:$0xff]
        %v909 = vld [vmem:[%s907 + $0x8] sm:$0xff]
        %v910 = vld [vmem:[%s907 + $0x10] sm:$0xff]
        %v911 = vld [vmem:[%s907 + $0x18] sm:$0xff]
        %913 = vset.pattern.permute.xlu0 0
        %914 = vperm.xlu0 %913, %v908
        %v915 = vpop.permute.xlu0 %914
        %918 = vset.pattern.permute.xlu0 0
        %919 = vperm.xlu0 %918, %v909
        %v920 = vpop.permute.xlu0 %919
        %923 = vset.pattern.permute.xlu0 0
        %924 = vperm.xlu0 %923, %v910
        %v925 = vpop.permute.xlu0 %924
        %928 = vset.pattern.permute.xlu0 0
        %929 = vperm.xlu0 %928, %v911
        %v930 = vpop.permute.xlu0 %929
        %v933 = vsel %vm615, %v903, 0
        %v936 = vsel %vm615, %v904, 0
        %v939 = vsel %vm615, %v905, 0
        %v942 = vsel %vm615, %v906, 0
        %944 = vmatprep.subr.mxu0 0.0
        %945 = vmatpush1.msra.mxu0 %v898
        %946 = vmatprep.subr.mxu0 0.0
        %947 = vmatpush1.msra.mxu0 %v899
        %948 = vmatprep.subr.mxu0 0.0
        %949 = vmatpush1.msra.mxu0 %v900
        %950 = vmatprep.subr.mxu0 0.0
        %951 = vmatpush1.msra.mxu0 %v901
        %952 = vmatprep.subr.mxu0 0.0
        %953 = vmatpush1.msra.mxu0 %v885
        %954 = vmatprep.subr.mxu0 0.0
        %955 = vmatpush1.msra.mxu0 %v886
        %956 = vmatprep.subr.mxu0 0.0
        %957 = vmatpush1.msra.mxu0 %v887
        %958 = vmatprep.subr.mxu0 0.0
        %959 = vmatpush1.msra.mxu0 %v888
        %960 = vmatprep.subr.mxu0 0.0
        %961 = vmatpush1.msra.mxu0 %v853
        %962 = vmatprep.subr.mxu0 0.0
        %963 = vmatpush1.msra.mxu0 %v854
        %964 = vmatprep.subr.mxu0 0.0
        %965 = vmatpush1.msra.mxu0 %v855
        %966 = vmatprep.subr.mxu0 0.0
        %967 = vmatpush1.msra.mxu0 %v856
        %968 = vmatprep.subr.mxu0 0.0
        %969 = vmatpush1.msra.mxu0 0.0
        %970 = vmatprep.subr.mxu0 0.0
        %971 = vmatpush1.msra.mxu0 0.0
        %972 = vmatprep.subr.mxu0 0.0
        %973 = vmatpush1.msra.mxu0 0.0
        %974 = vmatprep.subr.mxu0 0.0
        %975 = vmatpush1.msra.mxu0 0.0
        %976 = vmatprep.subr.mxu0 0.0
        %977 = vmatpush1.msra.mxu0 0.0
        %978 = vmatprep.subr.mxu0 0.0
        %979 = vmatpush1.msra.mxu0 0.0
        %980 = vmatprep.subr.mxu0 0.0
        %981 = vmatpush1.msra.mxu0 0.0
        %982 = vmatprep.subr.mxu0 0.0
        %983 = vmatpush1.msra.mxu0 0.0
        %984 = vmatprep.subr.mxu0 0.0
        %985 = vmatpush1.msra.mxu0 0.0
        %986 = vmatprep.subr.mxu0 0.0
        %987 = vmatpush1.msra.mxu0 0.0
        %988 = vmatprep.subr.mxu0 0.0
        %989 = vmatpush1.msra.mxu0 0.0
        %990 = vmatprep.subr.mxu0 0.0
        %991 = vmatpush1.msra.mxu0 0.0
        %992 = vmatprep.subr.mxu0 0.0
        %993 = vmatpush1.msra.mxu0 0.0
        %994 = vmatprep.subr.mxu0 0.0
        %995 = vmatpush1.msra.mxu0 0.0
        %996 = vmatprep.subr.mxu0 0.0
        %997 = vmatpush1.msra.mxu0 0.0
        %998 = vmatprep.subr.mxu0 0.0
        %999 = vmatpush1.msra.mxu0 0.0
        %1000 = vmatprep.subr.mxu0 0.0
        %1001 = vmatpush1.msra.mxu0 0.0
        %1002 = vmatprep.subr.mxu0 0.0
        %1003 = vmatpush1.msra.mxu0 0.0
        %1004 = vmatprep.subr.mxu0 0.0
        %1005 = vmatpush1.msra.mxu0 0.0
        %1006 = vmatprep.subr.mxu0 0.0
        %1007 = vmatpush1.msra.mxu0 0.0
        %1008 = vmatprep.mubr.f32.mxu0 0.0
        %1009 = vmatmul.mubr.f32.gmra.mrb[0].mxu0 %v933
        %v1010 = vpop.f32.mrb[0].mxu0
        %v1011 = vadd.f32 %v915, %v1010
        %v1012 = vpop.f32.mrb[0].mxu0
        %1013 = vmatprep.mubr.f32.mxu0 0.0
        %1014 = vmatmul.mubr.f32.gmra.mrb[0].mxu0 %v936
        %v1015 = vpop.f32.mrb[0].mxu0
        %v1016 = vadd.f32 %v920, %v1015
        %v1017 = vpop.f32.mrb[0].mxu0
        %1018 = vmatprep.mubr.f32.mxu0 0.0
        %1019 = vmatmul.mubr.f32.gmra.mrb[0].mxu0 %v939
        %v1020 = vpop.f32.mrb[0].mxu0
        %v1021 = vadd.f32 %v925, %v1020
        %v1022 = vpop.f32.mrb[0].mxu0
        %1023 = vmatprep.mubr.f32.mxu0 0.0
        %1024 = vmatmul.mubr.f32.gmra.mrb[0].mxu0 %v942
        %v1025 = vpop.f32.mrb[0].mxu0
        %v1026 = vadd.f32 %v930, %v1025
        %v1027 = vpop.f32.mrb[0].mxu0
        %1028 = vdwg.mxu0
        %v1029 = vmax.f32 %v1011, 0.0
        %v1030 = vmax.f32 %v1016, 0.0
        %v1031 = vmax.f32 %v1021, 0.0
        %v1032 = vmax.f32 %v1026, 0.0
        %s1033 = scalar_lea.vmem %s6, 32
        %v1034 = vld [vmem:[%s1033] sm:$0xff]
        %v1035 = vld [vmem:[%s1033 + $0x8] sm:$0xff]
        %v1036 = vld [vmem:[%s1033 + $0x10] sm:$0xff]
        %v1037 = vld [vmem:[%s1033 + $0x18] sm:$0xff]
        %s1038 = scalar_lea.vmem %s7, 32
        %v1039 = vld [vmem:[%s1038] sm:$0xff]
        %v1040 = vld [vmem:[%s1038 + $0x8] sm:$0xff]
        %v1041 = vld [vmem:[%s1038 + $0x10] sm:$0xff]
        %v1042 = vld [vmem:[%s1038 + $0x18] sm:$0xff]
        %1044 = vset.pattern.permute.xlu0 0
        %1045 = vperm.xlu0 %1044, %v1039
        %v1046 = vpop.permute.xlu0 %1045
        %1049 = vset.pattern.permute.xlu0 0
        %1050 = vperm.xlu0 %1049, %v1040
        %v1051 = vpop.permute.xlu0 %1050
        %1054 = vset.pattern.permute.xlu0 0
        %1055 = vperm.xlu0 %1054, %v1041
        %v1056 = vpop.permute.xlu0 %1055
        %1059 = vset.pattern.permute.xlu0 0
        %1060 = vperm.xlu0 %1059, %v1042
        %v1061 = vpop.permute.xlu0 %1060
        %v1064 = vsel %vm745, %v1034, 0
        %v1067 = vsel %vm745, %v1035, 0
        %v1070 = vsel %vm745, %v1036, 0
        %v1073 = vsel %vm745, %v1037, 0
        %1075 = vmatprep.subr.mxu0 0.0
        %1076 = vmatpush1.msra.mxu0 %v1029
        %1077 = vmatprep.subr.mxu0 0.0
        %1078 = vmatpush1.msra.mxu0 %v1030
        %1079 = vmatprep.subr.mxu0 0.0
        %1080 = vmatpush1.msra.mxu0 %v1031
        %1081 = vmatprep.subr.mxu0 0.0
        %1082 = vmatpush1.msra.mxu0 %v1032
        %1083 = vmatprep.subr.mxu0 0.0
        %1084 = vmatpush1.msra.mxu0 0.0
        %1085 = vmatprep.subr.mxu0 0.0
        %1086 = vmatpush1.msra.mxu0 0.0
        %1087 = vmatprep.subr.mxu0 0.0
        %1088 = vmatpush1.msra.mxu0 0.0
        %1089 = vmatprep.subr.mxu0 0.0
        %1090 = vmatpush1.msra.mxu0 0.0
        %1091 = vmatprep.subr.mxu0 0.0
        %1092 = vmatpush1.msra.mxu0 0.0
        %1093 = vmatprep.subr.mxu0 0.0
        %1094 = vmatpush1.msra.mxu0 0.0
        %1095 = vmatprep.subr.mxu0 0.0
        %1096 = vmatpush1.msra.mxu0 0.0
        %1097 = vmatprep.subr.mxu0 0.0
        %1098 = vmatpush1.msra.mxu0 0.0
        %1099 = vmatprep.subr.mxu0 0.0
        %1100 = vmatpush1.msra.mxu0 0.0
        %1101 = vmatprep.subr.mxu0 0.0
        %1102 = vmatpush1.msra.mxu0 0.0
        %1103 = vmatprep.subr.mxu0 0.0
        %1104 = vmatpush1.msra.mxu0 0.0
        %1105 = vmatprep.subr.mxu0 0.0
        %1106 = vmatpush1.msra.mxu0 0.0
        %1107 = vmatprep.subr.mxu0 0.0
        %1108 = vmatpush1.msra.mxu0 0.0
        %1109 = vmatprep.subr.mxu0 0.0
        %1110 = vmatpush1.msra.mxu0 0.0
        %1111 = vmatprep.subr.mxu0 0.0
        %1112 = vmatpush1.msra.mxu0 0.0
        %1113 = vmatprep.subr.mxu0 0.0
        %1114 = vmatpush1.msra.mxu0 0.0
        %1115 = vmatprep.subr.mxu0 0.0
        %1116 = vmatpush1.msra.mxu0 0.0
        %1117 = vmatprep.subr.mxu0 0.0
        %1118 = vmatpush1.msra.mxu0 0.0
        %1119 = vmatprep.subr.mxu0 0.0
        %1120 = vmatpush1.msra.mxu0 0.0
        %1121 = vmatprep.subr.mxu0 0.0
        %1122 = vmatpush1.msra.mxu0 0.0
        %1123 = vmatprep.subr.mxu0 0.0
        %1124 = vmatpush1.msra.mxu0 0.0
        %1125 = vmatprep.subr.mxu0 0.0
        %1126 = vmatpush1.msra.mxu0 0.0
        %1127 = vmatprep.subr.mxu0 0.0
        %1128 = vmatpush1.msra.mxu0 0.0
        %1129 = vmatprep.subr.mxu0 0.0
        %1130 = vmatpush1.msra.mxu0 0.0
        %1131 = vmatprep.subr.mxu0 0.0
        %1132 = vmatpush1.msra.mxu0 0.0
        %1133 = vmatprep.subr.mxu0 0.0
        %1134 = vmatpush1.msra.mxu0 0.0
        %1135 = vmatprep.subr.mxu0 0.0
        %1136 = vmatpush1.msra.mxu0 0.0
        %1137 = vmatprep.subr.mxu0 0.0
        %1138 = vmatpush1.msra.mxu0 0.0
        %1139 = vmatprep.mubr.f32.mxu0 0.0
        %1140 = vmatmul.mubr.f32.gmra.mrb[0].mxu0 %v1064
        %v1141 = vpop.f32.mrb[0].mxu0
        %v1142 = vadd.f32 %v1046, %v1141
        %v1143 = vpop.f32.mrb[0].mxu0
        %1144 = vmatprep.mubr.f32.mxu0 0.0
        %1145 = vmatmul.mubr.f32.gmra.mrb[0].mxu0 %v1067
        %v1146 = vpop.f32.mrb[0].mxu0
        %v1147 = vadd.f32 %v1051, %v1146
        %v1148 = vpop.f32.mrb[0].mxu0
        %1149 = vmatprep.mubr.f32.mxu0 0.0
        %1150 = vmatmul.mubr.f32.gmra.mrb[0].mxu0 %v1070
        %v1151 = vpop.f32.mrb[0].mxu0
        %v1152 = vadd.f32 %v1056, %v1151
        %v1153 = vpop.f32.mrb[0].mxu0
        %1154 = vmatprep.mubr.f32.mxu0 0.0
        %1155 = vmatmul.mubr.f32.gmra.mrb[0].mxu0 %v1073
        %v1156 = vpop.f32.mrb[0].mxu0
        %v1157 = vadd.f32 %v1061, %v1156
        %v1158 = vpop.f32.mrb[0].mxu0
        %1159 = vdwg.mxu0
        %v1160 = vadd.f32 %v853, %v1142
        %v1161 = vadd.f32 %v854, %v1147
        %v1162 = vadd.f32 %v855, %v1152
        %v1163 = vadd.f32 %v856, %v1157
        %v1164 = vmul.f32 %v1160, %v851
        %v1165 = vmul.f32 %v1161, %v851
        %v1166 = vmul.f32 %v1162, %v851
        %v1167 = vmul.f32 %v1163, %v851
        %1168 = vrot.lane.b32.xlu0 %v1164, 4
        %v1169 = vpop.permute.xlu0 %1168
        %1170 = vrot.lane.b32.xlu0 %v1165, 4
        %v1171 = vpop.permute.xlu0 %1170
        %1172 = vrot.lane.b32.xlu0 %v1166, 4
        %v1173 = vpop.permute.xlu0 %1172
        %1174 = vrot.lane.b32.xlu0 %v1167, 4
        %v1175 = vpop.permute.xlu0 %1174
        %1177 = vset.pattern.permute.xlu0 0
        %1178 = vperm.xlu0 %1177, %v1164
        %v1179 = vpop.permute.xlu0 %1178
        %1182 = vset.pattern.permute.xlu0 0
        %1183 = vperm.xlu0 %1182, %v1165
        %v1184 = vpop.permute.xlu0 %1183
        %1187 = vset.pattern.permute.xlu0 0
        %1188 = vperm.xlu0 %1187, %v1166
        %v1189 = vpop.permute.xlu0 %1188
        %1192 = vset.pattern.permute.xlu0 0
        %1193 = vperm.xlu0 %1192, %v1167
        %v1194 = vpop.permute.xlu0 %1193
        %v1196 = vsel %vm889, %v1179, %v1169
        %v1197 = vsel %vm889, %v1184, %v1171
        %v1198 = vsel %vm889, %v1189, %v1173
        %v1199 = vsel %vm889, %v1194, %v1175
        %vm1200 = vcmp.lt.s32.totalorder %v540, 8
        %1201 = vrot.lane.b32.xlu0 %v1164, 8
        %v1202 = vpop.permute.xlu0 %1201
        %1203 = vrot.lane.b32.xlu0 %v1165, 8
        %v1204 = vpop.permute.xlu0 %1203
        %1205 = vrot.lane.b32.xlu0 %v1166, 8
        %v1206 = vpop.permute.xlu0 %1205
        %1207 = vrot.lane.b32.xlu0 %v1167, 8
        %v1208 = vpop.permute.xlu0 %1207
        %v1209 = vsel %vm1200, %v1179, %v1202
        %v1210 = vsel %vm1200, %v1184, %v1204
        %v1211 = vsel %vm1200, %v1189, %v1206
        %v1212 = vsel %vm1200, %v1194, %v1208
        %s1213 = scalar_lea.vmem %s4, 64
        %v1214 = vld [vmem:[%s1213] sm:$0xff]
        %v1215 = vld [vmem:[%s1213 + $0x8] sm:$0xff]
        %v1216 = vld [vmem:[%s1213 + $0x10] sm:$0xff]
        %v1217 = vld [vmem:[%s1213 + $0x18] sm:$0xff]
        %s1218 = scalar_lea.vmem %s5, 64
        %v1219 = vld [vmem:[%s1218] sm:$0xff]
        %v1220 = vld [vmem:[%s1218 + $0x8] sm:$0xff]
        %v1221 = vld [vmem:[%s1218 + $0x10] sm:$0xff]
        %v1222 = vld [vmem:[%s1218 + $0x18] sm:$0xff]
        %1224 = vset.pattern.permute.xlu0 0
        %1225 = vperm.xlu0 %1224, %v1219
        %v1226 = vpop.permute.xlu0 %1225
        %1229 = vset.pattern.permute.xlu0 0
        %1230 = vperm.xlu0 %1229, %v1220
        %v1231 = vpop.permute.xlu0 %1230
        %1234 = vset.pattern.permute.xlu0 0
        %1235 = vperm.xlu0 %1234, %v1221
        %v1236 = vpop.permute.xlu0 %1235
        %1239 = vset.pattern.permute.xlu0 0
        %1240 = vperm.xlu0 %1239, %v1222
        %v1241 = vpop.permute.xlu0 %1240
        %v1244 = vsel %vm615, %v1214, 0
        %v1247 = vsel %vm615, %v1215, 0
        %v1250 = vsel %vm615, %v1216, 0
        %v1253 = vsel %vm615, %v1217, 0
        %1255 = vmatprep.subr.mxu0 0.0
        %1256 = vmatpush1.msra.mxu0 %v1209
        %1257 = vmatprep.subr.mxu0 0.0
        %1258 = vmatpush1.msra.mxu0 %v1210
        %1259 = vmatprep.subr.mxu0 0.0
        %1260 = vmatpush1.msra.mxu0 %v1211
        %1261 = vmatprep.subr.mxu0 0.0
        %1262 = vmatpush1.msra.mxu0 %v1212
        %1263 = vmatprep.subr.mxu0 0.0
        %1264 = vmatpush1.msra.mxu0 %v1196
        %1265 = vmatprep.subr.mxu0 0.0
        %1266 = vmatpush1.msra.mxu0 %v1197
        %1267 = vmatprep.subr.mxu0 0.0
        %1268 = vmatpush1.msra.mxu0 %v1198
        %1269 = vmatprep.subr.mxu0 0.0
        %1270 = vmatpush1.msra.mxu0 %v1199
        %1271 = vmatprep.subr.mxu0 0.0
        %1272 = vmatpush1.msra.mxu0 %v1164
        %1273 = vmatprep.subr.mxu0 0.0
        %1274 = vmatpush1.msra.mxu0 %v1165
        %1275 = vmatprep.subr.mxu0 0.0
        %1276 = vmatpush1.msra.mxu0 %v1166
        %1277 = vmatprep.subr.mxu0 0.0
        %1278 = vmatpush1.msra.mxu0 %v1167
        %1279 = vmatprep.subr.mxu0 0.0
        %1280 = vmatpush1.msra.mxu0 0.0
        %1281 = vmatprep.subr.mxu0 0.0
        %1282 = vmatpush1.msra.mxu0 0.0
        %1283 = vmatprep.subr.mxu0 0.0
        %1284 = vmatpush1.msra.mxu0 0.0
        %1285 = vmatprep.subr.mxu0 0.0
        %1286 = vmatpush1.msra.mxu0 0.0
        %1287 = vmatprep.subr.mxu0 0.0
        %1288 = vmatpush1.msra.mxu0 0.0
        %1289 = vmatprep.subr.mxu0 0.0
        %1290 = vmatpush1.msra.mxu0 0.0
        %1291 = vmatprep.subr.mxu0 0.0
        %1292 = vmatpush1.msra.mxu0 0.0
        %1293 = vmatprep.subr.mxu0 0.0
        %1294 = vmatpush1.msra.mxu0 0.0
        %1295 = vmatprep.subr.mxu0 0.0
        %1296 = vmatpush1.msra.mxu0 0.0
        %1297 = vmatprep.subr.mxu0 0.0
        %1298 = vmatpush1.msra.mxu0 0.0
        %1299 = vmatprep.subr.mxu0 0.0
        %1300 = vmatpush1.msra.mxu0 0.0
        %1301 = vmatprep.subr.mxu0 0.0
        %1302 = vmatpush1.msra.mxu0 0.0
        %1303 = vmatprep.subr.mxu0 0.0
        %1304 = vmatpush1.msra.mxu0 0.0
        %1305 = vmatprep.subr.mxu0 0.0
        %1306 = vmatpush1.msra.mxu0 0.0
        %1307 = vmatprep.subr.mxu0 0.0
        %1308 = vmatpush1.msra.mxu0 0.0
        %1309 = vmatprep.subr.mxu0 0.0
        %1310 = vmatpush1.msra.mxu0 0.0
        %1311 = vmatprep.subr.mxu0 0.0
        %1312 = vmatpush1.msra.mxu0 0.0
        %1313 = vmatprep.subr.mxu0 0.0
        %1314 = vmatpush1.msra.mxu0 0.0
        %1315 = vmatprep.subr.mxu0 0.0
        %1316 = vmatpush1.msra.mxu0 0.0
        %1317 = vmatprep.subr.mxu0 0.0
        %1318 = vmatpush1.msra.mxu0 0.0
        %1319 = vmatprep.mubr.f32.mxu0 0.0
        %1320 = vmatmul.mubr.f32.gmra.mrb[0].mxu0 %v1244
        %v1321 = vpop.f32.mrb[0].mxu0
        %v1322 = vadd.f32 %v1226, %v1321
        %v1323 = vpop.f32.mrb[0].mxu0
        %1324 = vmatprep.mubr.f32.mxu0 0.0
        %1325 = vmatmul.mubr.f32.gmra.mrb[0].mxu0 %v1247
        %v1326 = vpop.f32.mrb[0].mxu0
        %v1327 = vadd.f32 %v1231, %v1326
        %v1328 = vpop.f32.mrb[0].mxu0
        %1329 = vmatprep.mubr.f32.mxu0 0.0
        %1330 = vmatmul.mubr.f32.gmra.mrb[0].mxu0 %v1250
        %v1331 = vpop.f32.mrb[0].mxu0
        %v1332 = vadd.f32 %v1236, %v1331
        %v1333 = vpop.f32.mrb[0].mxu0
        %1334 = vmatprep.mubr.f32.mxu0 0.0
        %1335 = vmatmul.mubr.f32.gmra.mrb[0].mxu0 %v1253
        %v1336 = vpop.f32.mrb[0].mxu0
        %v1337 = vadd.f32 %v1241, %v1336
        %v1338 = vpop.f32.mrb[0].mxu0
        %1339 = vdwg.mxu0
        %v1340 = vmax.f32 %v1322, 0.0
        %v1341 = vmax.f32 %v1327, 0.0
        %v1342 = vmax.f32 %v1332, 0.0
        %v1343 = vmax.f32 %v1337, 0.0
        %s1344 = scalar_lea.vmem %s6, 64
        %v1345 = vld [vmem:[%s1344] sm:$0xff]
        %v1346 = vld [vmem:[%s1344 + $0x8] sm:$0xff]
        %v1347 = vld [vmem:[%s1344 + $0x10] sm:$0xff]
        %v1348 = vld [vmem:[%s1344 + $0x18] sm:$0xff]
        %s1349 = scalar_lea.vmem %s7, 64
        %v1350 = vld [vmem:[%s1349] sm:$0xff]
        %v1351 = vld [vmem:[%s1349 + $0x8] sm:$0xff]
        %v1352 = vld [vmem:[%s1349 + $0x10] sm:$0xff]
        %v1353 = vld [vmem:[%s1349 + $0x18] sm:$0xff]
        %1355 = vset.pattern.permute.xlu0 0
        %1356 = vperm.xlu0 %1355, %v1350
        %v1357 = vpop.permute.xlu0 %1356
        %1360 = vset.pattern.permute.xlu0 0
        %1361 = vperm.xlu0 %1360, %v1351
        %v1362 = vpop.permute.xlu0 %1361
        %1365 = vset.pattern.permute.xlu0 0
        %1366 = vperm.xlu0 %1365, %v1352
        %v1367 = vpop.permute.xlu0 %1366
        %1370 = vset.pattern.permute.xlu0 0
        %1371 = vperm.xlu0 %1370, %v1353
        %v1372 = vpop.permute.xlu0 %1371
        %v1375 = vsel %vm745, %v1345, 0
        %v1378 = vsel %vm745, %v1346, 0
        %v1381 = vsel %vm745, %v1347, 0
        %v1384 = vsel %vm745, %v1348, 0
        %1386 = vmatprep.subr.mxu0 0.0
        %1387 = vmatpush1.msra.mxu0 %v1340
        %1388 = vmatprep.subr.mxu0 0.0
        %1389 = vmatpush1.msra.mxu0 %v1341
        %1390 = vmatprep.subr.mxu0 0.0
        %1391 = vmatpush1.msra.mxu0 %v1342
        %1392 = vmatprep.subr.mxu0 0.0
        %1393 = vmatpush1.msra.mxu0 %v1343
        %1394 = vmatprep.subr.mxu0 0.0
        %1395 = vmatpush1.msra.mxu0 0.0
        %1396 = vmatprep.subr.mxu0 0.0
        %1397 = vmatpush1.msra.mxu0 0.0
        %1398 = vmatprep.subr.mxu0 0.0
        %1399 = vmatpush1.msra.mxu0 0.0
        %1400 = vmatprep.subr.mxu0 0.0
        %1401 = vmatpush1.msra.mxu0 0.0
        %1402 = vmatprep.subr.mxu0 0.0
        %1403 = vmatpush1.msra.mxu0 0.0
        %1404 = vmatprep.subr.mxu0 0.0
        %1405 = vmatpush1.msra.mxu0 0.0
        %1406 = vmatprep.subr.mxu0 0.0
        %1407 = vmatpush1.msra.mxu0 0.0
        %1408 = vmatprep.subr.mxu0 0.0
        %1409 = vmatpush1.msra.mxu0 0.0
        %1410 = vmatprep.subr.mxu0 0.0
        %1411 = vmatpush1.msra.mxu0 0.0
        %1412 = vmatprep.subr.mxu0 0.0
        %1413 = vmatpush1.msra.mxu0 0.0
        %1414 = vmatprep.subr.mxu0 0.0
        %1415 = vmatpush1.msra.mxu0 0.0
        %1416 = vmatprep.subr.mxu0 0.0
        %1417 = vmatpush1.msra.mxu0 0.0
        %1418 = vmatprep.subr.mxu0 0.0
        %1419 = vmatpush1.msra.mxu0 0.0
        %1420 = vmatprep.subr.mxu0 0.0
        %1421 = vmatpush1.msra.mxu0 0.0
        %1422 = vmatprep.subr.mxu0 0.0
        %1423 = vmatpush1.msra.mxu0 0.0
        %1424 = vmatprep.subr.mxu0 0.0
        %1425 = vmatpush1.msra.mxu0 0.0
        %1426 = vmatprep.subr.mxu0 0.0
        %1427 = vmatpush1.msra.mxu0 0.0
        %1428 = vmatprep.subr.mxu0 0.0
        %1429 = vmatpush1.msra.mxu0 0.0
        %1430 = vmatprep.subr.mxu0 0.0
        %1431 = vmatpush1.msra.mxu0 0.0
        %1432 = vmatprep.subr.mxu0 0.0
        %1433 = vmatpush1.msra.mxu0 0.0
        %1434 = vmatprep.subr.mxu0 0.0
        %1435 = vmatpush1.msra.mxu0 0.0
        %1436 = vmatprep.subr.mxu0 0.0
        %1437 = vmatpush1.msra.mxu0 0.0
        %1438 = vmatprep.subr.mxu0 0.0
        %1439 = vmatpush1.msra.mxu0 0.0
        %1440 = vmatprep.subr.mxu0 0.0
        %1441 = vmatpush1.msra.mxu0 0.0
        %1442 = vmatprep.subr.mxu0 0.0
        %1443 = vmatpush1.msra.mxu0 0.0
        %1444 = vmatprep.subr.mxu0 0.0
        %1445 = vmatpush1.msra.mxu0 0.0
        %1446 = vmatprep.subr.mxu0 0.0
        %1447 = vmatpush1.msra.mxu0 0.0
        %1448 = vmatprep.subr.mxu0 0.0
        %1449 = vmatpush1.msra.mxu0 0.0
        %1450 = vmatprep.mubr.f32.mxu0 0.0
        %1451 = vmatmul.mubr.f32.gmra.mrb[0].mxu0 %v1375
        %v1452 = vpop.f32.mrb[0].mxu0
        %v1453 = vadd.f32 %v1357, %v1452
        %v1454 = vpop.f32.mrb[0].mxu0
        %1455 = vmatprep.mubr.f32.mxu0 0.0
        %1456 = vmatmul.mubr.f32.gmra.mrb[0].mxu0 %v1378
        %v1457 = vpop.f32.mrb[0].mxu0
        %v1458 = vadd.f32 %v1362, %v1457
        %v1459 = vpop.f32.mrb[0].mxu0
        %1460 = vmatprep.mubr.f32.mxu0 0.0
        %1461 = vmatmul.mubr.f32.gmra.mrb[0].mxu0 %v1381
        %v1462 = vpop.f32.mrb[0].mxu0
        %v1463 = vadd.f32 %v1367, %v1462
        %v1464 = vpop.f32.mrb[0].mxu0
        %1465 = vmatprep.mubr.f32.mxu0 0.0
        %1466 = vmatmul.mubr.f32.gmra.mrb[0].mxu0 %v1384
        %v1467 = vpop.f32.mrb[0].mxu0
        %v1468 = vadd.f32 %v1372, %v1467
        %v1469 = vpop.f32.mrb[0].mxu0
        %1470 = vdwg.mxu0
        %v1471 = vadd.f32 %v1164, %v1453
        %v1472 = vadd.f32 %v1165, %v1458
        %v1473 = vadd.f32 %v1166, %v1463
        %v1474 = vadd.f32 %v1167, %v1468
        %v1475 = vmul.f32 %v1471, %v851
        %v1476 = vmul.f32 %v1472, %v851
        %v1477 = vmul.f32 %v1473, %v851
        %v1478 = vmul.f32 %v1474, %v851
        %1479 = vst [vmem:[%s394] sm:$0xff] %v1475
        %1480 = vst [vmem:[%s394 + $0x8] sm:$0xff] %v1476
        %1481 = vst [vmem:[%s394 + $0x10] sm:$0xff] %v1477
        %1482 = vst [vmem:[%s394 + $0x18] sm:$0xff] %v1478
        %1483 = vxpose.xlu0.b32.start [1/16] %v1475, 128
        %1484 = vxpose.xlu0.b32.cont [2/16] %v1476, 128
        %1485 = vxpose.xlu0.b32.cont [3/16] %v1477, 128
        %1486 = vxpose.xlu0.b32.cont [4/16] %v1478, 128
        %1487 = vxpose.xlu0.b32.cont [5/16] 0.0, 128
        %1488 = vxpose.xlu0.b32.cont [6/16] 0.0, 128
        %1489 = vxpose.xlu0.b32.cont [7/16] 0.0, 128
        %1490 = vxpose.xlu0.b32.cont [8/16] 0.0, 128
        %1491 = vxpose.xlu0.b32.cont [9/16] 0.0, 128
        %1492 = vxpose.xlu0.b32.cont [10/16] 0.0, 128
        %1493 = vxpose.xlu0.b32.cont [11/16] 0.0, 128
        %1494 = vxpose.xlu0.b32.cont [12/16] 0.0, 128
        %1495 = vxpose.xlu0.b32.cont [13/16] 0.0, 128
        %1496 = vxpose.xlu0.b32.cont [14/16] 0.0, 128
        %1497 = vxpose.xlu0.b32.cont [15/16] 0.0, 128
        %1498 = vxpose.xlu0.b32.end [16/16] 0.0, 128
        %v1499 = vpop.trf.xlu0
        %v1500 = vpop.trf.xlu0
        %v1501 = vpop.trf.xlu0
        %v1502 = vpop.trf.xlu0
        %v1503 = vpop.trf.xlu0
        %v1504 = vpop.trf.xlu0
        %v1505 = vpop.trf.xlu0
        %v1506 = vpop.trf.xlu0
        %v1507 = vpop.trf.xlu0
        %v1508 = vpop.trf.xlu0
        %v1509 = vpop.trf.xlu0
        %v1510 = vpop.trf.xlu0
        %v1511 = vpop.trf.xlu0
        %v1512 = vpop.trf.xlu0
        %v1513 = vpop.trf.xlu0
        %v1514 = vpop.trf.xlu0
        %v1515 = vld [vmem:[%s8] sm:$0xff]
        %v1516 = vld [vmem:[%s8 + $0x8] sm:$0xff]
        %v1517 = vld [vmem:[%s8 + $0x10] sm:$0xff]
        %v1518 = vld [vmem:[%s8 + $0x18] sm:$0xff]
        %v1519 = vld [vmem:[%s9] sm:$0x1]
        %v1521 = vlaneseq
        %v1522 = vshrl.u32 %v1521, 7
        %v1523 = vsub.s32 0, %v1522
        %v1524 = vrot.slane %v1519, %v1523
        %v1527 = vsel %vm745, %v1499, 0
        %v1530 = vsel %vm745, %v1500, 0
        %v1533 = vsel %vm745, %v1501, 0
        %v1536 = vsel %vm745, %v1502, 0
        %v1539 = vsel %vm745, %v1503, 0
        %v1542 = vsel %vm745, %v1504, 0
        %v1545 = vsel %vm745, %v1505, 0
        %v1548 = vsel %vm745, %v1506, 0
        %v1551 = vsel %vm745, %v1507, 0
        %v1554 = vsel %vm745, %v1508, 0
        %v1557 = vsel %vm745, %v1509, 0
        %v1560 = vsel %vm745, %v1510, 0
        %v1563 = vsel %vm745, %v1511, 0
        %v1566 = vsel %vm745, %v1512, 0
        %v1569 = vsel %vm745, %v1513, 0
        %v1572 = vsel %vm745, %v1514, 0
        %1574 = vmatprep.subr.mxu0 0.0
        %1575 = vmatpush1.msra.mxu0 %v1515
        %1576 = vmatprep.subr.mxu0 0.0
        %1577 = vmatpush1.msra.mxu0 %v1516
        %1578 = vmatprep.subr.mxu0 0.0
        %1579 = vmatpush1.msra.mxu0 %v1517
        %1580 = vmatprep.subr.mxu0 0.0
        %1581 = vmatpush1.msra.mxu0 %v1518
        %1582 = vmatprep.subr.mxu0 0.0
        %1583 = vmatpush1.msra.mxu0 0.0
        %1584 = vmatprep.subr.mxu0 0.0
        %1585 = vmatpush1.msra.mxu0 0.0
        %1586 = vmatprep.subr.mxu0 0.0
        %1587 = vmatpush1.msra.mxu0 0.0
        %1588 = vmatprep.subr.mxu0 0.0
        %1589 = vmatpush1.msra.mxu0 0.0
        %1590 = vmatprep.subr.mxu0 0.0
        %1591 = vmatpush1.msra.mxu0 0.0
        %1592 = vmatprep.subr.mxu0 0.0
        %1593 = vmatpush1.msra.mxu0 0.0
        %1594 = vmatprep.subr.mxu0 0.0
        %1595 = vmatpush1.msra.mxu0 0.0
        %1596 = vmatprep.subr.mxu0 0.0
        %1597 = vmatpush1.msra.mxu0 0.0
        %1598 = vmatprep.subr.mxu0 0.0
        %1599 = vmatpush1.msra.mxu0 0.0
        %1600 = vmatprep.subr.mxu0 0.0
        %1601 = vmatpush1.msra.mxu0 0.0
        %1602 = vmatprep.subr.mxu0 0.0
        %1603 = vmatpush1.msra.mxu0 0.0
        %1604 = vmatprep.subr.mxu0 0.0
        %1605 = vmatpush1.msra.mxu0 0.0
        %1606 = vmatprep.subr.mxu0 0.0
        %1607 = vmatpush1.msra.mxu0 0.0
        %1608 = vmatprep.subr.mxu0 0.0
        %1609 = vmatpush1.msra.mxu0 0.0
        %1610 = vmatprep.subr.mxu0 0.0
        %1611 = vmatpush1.msra.mxu0 0.0
        %1612 = vmatprep.subr.mxu0 0.0
        %1613 = vmatpush1.msra.mxu0 0.0
        %1614 = vmatprep.subr.mxu0 0.0
        %1615 = vmatpush1.msra.mxu0 0.0
        %1616 = vmatprep.subr.mxu0 0.0
        %1617 = vmatpush1.msra.mxu0 0.0
        %1618 = vmatprep.subr.mxu0 0.0
        %1619 = vmatpush1.msra.mxu0 0.0
        %1620 = vmatprep.subr.mxu0 0.0
        %1621 = vmatpush1.msra.mxu0 0.0
        %1622 = vmatprep.subr.mxu0 0.0
        %1623 = vmatpush1.msra.mxu0 0.0
        %1624 = vmatprep.subr.mxu0 0.0
        %1625 = vmatpush1.msra.mxu0 0.0
        %1626 = vmatprep.subr.mxu0 0.0
        %1627 = vmatpush1.msra.mxu0 0.0
        %1628 = vmatprep.subr.mxu0 0.0
        %1629 = vmatpush1.msra.mxu0 0.0
        %1630 = vmatprep.subr.mxu0 0.0
        %1631 = vmatpush1.msra.mxu0 0.0
        %1632 = vmatprep.subr.mxu0 0.0
        %1633 = vmatpush1.msra.mxu0 0.0
        %1634 = vmatprep.subr.mxu0 0.0
        %1635 = vmatpush1.msra.mxu0 0.0
        %1636 = vmatprep.subr.mxu0 0.0
        %1637 = vmatpush1.msra.mxu0 0.0
        %1638 = vmatprep.mubr.f32.mxu0 0.0
        %1639 = vmatmul.mubr.f32.gmra.mrb[0].mxu0 %v1527
        %v1640 = vpop.f32.mrb[0].mxu0
        %v1641 = vadd.f32 %v1524, %v1640
        %v1642 = vpop.f32.mrb[0].mxu0
        %1643 = vmatprep.mubr.f32.mxu0 0.0
        %1644 = vmatmul.mubr.f32.gmra.mrb[0].mxu0 %v1530
        %v1645 = vpop.f32.mrb[0].mxu0
        %v1646 = vadd.f32 %v1524, %v1645
        %v1647 = vpop.f32.mrb[0].mxu0
        %1648 = vmatprep.mubr.f32.mxu0 0.0
        %1649 = vmatmul.mubr.f32.gmra.mrb[0].mxu0 %v1533
        %v1650 = vpop.f32.mrb[0].mxu0
        %v1651 = vadd.f32 %v1524, %v1650
        %v1652 = vpop.f32.mrb[0].mxu0
        %1653 = vmatprep.mubr.f32.mxu0 0.0
        %1654 = vmatmul.mubr.f32.gmra.mrb[0].mxu0 %v1536
        %v1655 = vpop.f32.mrb[0].mxu0
        %v1656 = vadd.f32 %v1524, %v1655
        %v1657 = vpop.f32.mrb[0].mxu0
        %1658 = vmatprep.mubr.f32.mxu0 0.0
        %1659 = vmatmul.mubr.f32.gmra.mrb[0].mxu0 %v1539
        %v1660 = vpop.f32.mrb[0].mxu0
        %v1661 = vadd.f32 %v1524, %v1660
        %v1662 = vpop.f32.mrb[0].mxu0
        %1663 = vmatprep.mubr.f32.mxu0 0.0
        %1664 = vmatmul.mubr.f32.gmra.mrb[0].mxu0 %v1542
        %v1665 = vpop.f32.mrb[0].mxu0
        %v1666 = vadd.f32 %v1524, %v1665
        %v1667 = vpop.f32.mrb[0].mxu0
        %1668 = vmatprep.mubr.f32.mxu0 0.0
        %1669 = vmatmul.mubr.f32.gmra.mrb[0].mxu0 %v1545
        %v1670 = vpop.f32.mrb[0].mxu0
        %v1671 = vadd.f32 %v1524, %v1670
        %v1672 = vpop.f32.mrb[0].mxu0
        %1673 = vmatprep.mubr.f32.mxu0 0.0
        %1674 = vmatmul.mubr.f32.gmra.mrb[0].mxu0 %v1548
        %v1675 = vpop.f32.mrb[0].mxu0
        %v1676 = vadd.f32 %v1524, %v1675
        %v1677 = vpop.f32.mrb[0].mxu0
        %1678 = vmatprep.mubr.f32.mxu0 0.0
        %1679 = vmatmul.mubr.f32.gmra.mrb[0].mxu0 %v1551
        %v1680 = vpop.f32.mrb[0].mxu0
        %v1681 = vadd.f32 %v1524, %v1680
        %v1682 = vpop.f32.mrb[0].mxu0
        %1683 = vmatprep.mubr.f32.mxu0 0.0
        %1684 = vmatmul.mubr.f32.gmra.mrb[0].mxu0 %v1554
        %v1685 = vpop.f32.mrb[0].mxu0
        %v1686 = vadd.f32 %v1524, %v1685
        %v1687 = vpop.f32.mrb[0].mxu0
        %1688 = vmatprep.mubr.f32.mxu0 0.0
        %1689 = vmatmul.mubr.f32.gmra.mrb[0].mxu0 %v1557
        %v1690 = vpop.f32.mrb[0].mxu0
        %v1691 = vadd.f32 %v1524, %v1690
        %v1692 = vpop.f32.mrb[0].mxu0
        %1693 = vmatprep.mubr.f32.mxu0 0.0
        %1694 = vmatmul.mubr.f32.gmra.mrb[0].mxu0 %v1560
        %v1695 = vpop.f32.mrb[0].mxu0
        %v1696 = vadd.f32 %v1524, %v1695
        %v1697 = vpop.f32.mrb[0].mxu0
        %1698 = vmatprep.mubr.f32.mxu0 0.0
        %1699 = vmatmul.mubr.f32.gmra.mrb[0].mxu0 %v1563
        %v1700 = vpop.f32.mrb[0].mxu0
        %v1701 = vadd.f32 %v1524, %v1700
        %v1702 = vpop.f32.mrb[0].mxu0
        %1703 = vmatprep.mubr.f32.mxu0 0.0
        %1704 = vmatmul.mubr.f32.gmra.mrb[0].mxu0 %v1566
        %v1705 = vpop.f32.mrb[0].mxu0
        %v1706 = vadd.f32 %v1524, %v1705
        %v1707 = vpop.f32.mrb[0].mxu0
        %1708 = vmatprep.mubr.f32.mxu0 0.0
        %1709 = vmatmul.mubr.f32.gmra.mrb[0].mxu0 %v1569
        %v1710 = vpop.f32.mrb[0].mxu0
        %v1711 = vadd.f32 %v1524, %v1710
        %v1712 = vpop.f32.mrb[0].mxu0
        %1713 = vmatprep.mubr.f32.mxu0 0.0
        %1714 = vmatmul.mubr.f32.gmra.mrb[0].mxu0 %v1572
        %v1715 = vpop.f32.mrb[0].mxu0
        %v1716 = vadd.f32 %v1524, %v1715
        %v1717 = vpop.f32.mrb[0].mxu0
        %1718 = vdwg.mxu0
        %1719 = vst [vmem:[%s401] sm:$0xff] %v1641
        %1720 = vst [vmem:[%s401 + $0x8] sm:$0xff] %v1646
        %1721 = vst [vmem:[%s401 + $0x10] sm:$0xff] %v1651
        %1722 = vst [vmem:[%s401 + $0x18] sm:$0xff] %v1656
        %1723 = vst [vmem:[%s401 + $0x20] sm:$0xff] %v1661
        %1724 = vst [vmem:[%s401 + $0x28] sm:$0xff] %v1666
        %1725 = vst [vmem:[%s401 + $0x30] sm:$0xff] %v1671
        %1726 = vst [vmem:[%s401 + $0x38] sm:$0xff] %v1676
        %1727 = vst [vmem:[%s401 + $0x40] sm:$0xff] %v1681
        %1728 = vst [vmem:[%s401 + $0x48] sm:$0xff] %v1686
        %1729 = vst [vmem:[%s401 + $0x50] sm:$0xff] %v1691
        %1730 = vst [vmem:[%s401 + $0x58] sm:$0xff] %v1696
        %1731 = vst [vmem:[%s401 + $0x60] sm:$0xff] %v1701
        %1732 = vst [vmem:[%s401 + $0x68] sm:$0xff] %v1706
        %1733 = vst [vmem:[%s401 + $0x70] sm:$0xff] %v1711
        %1734 = vst [vmem:[%s401 + $0x78] sm:$0xff] %v1716
        %s1735 = sand.u32 %s257, 1
        %s1736 = scalar_lea.sflag [#allocation3], %s1735
        %s1737 = sand.u32 %s257, 1
        %s1738 = smul.addr %s1737, 32
        %s1739 = scalar_lea.vmem [#allocation2], %s1738
        %s1740 = sand.u32 %s283, 1
        %s1741 = scalar_lea.sflag [#allocation5], %s1740
        %s1742 = sand.u32 %s283, 1
        %s1743 = smul.addr %s1742, 128
        %s1744 = scalar_lea.vmem [#allocation4], %s1743
        // Predicated region
        $region61: #{tpu_custom_call.1} parent=59 // pred_check
          %p1745 = pneg %p267
        $region62: #{tpu_custom_call.1} parent=59 // pred_check_branch
          %1747 = sbr.rel (%p1745) target = $region64
        $region63: #{tpu_custom_call.1} parent=59 // pred_region
          %s1749 = ssub.s32 512, 512
          %1750 = vsyncadd %s1736, %s1749
          %s1751 = smul.addr %s29, 4
          %s1752 = smul.addr %s1751, 128
          %s1753 = scalar_lea.hbm %s10, %s1752
          %s1754 = sshll.u32 %s1739, 4
          %s1755 = int_to_ptr.vmem [resolvable:$true] %s1754
          %1760 = dma.vmem_to_hbm [thread:$0]  %s1755, 512, %s1753, %s1736, 128, 128, 8
        $region64: #{tpu_custom_call.1} parent=59 // pred_fallthru
          _
        // Predicated region
        $region65: #{tpu_custom_call.1} parent=59 // pred_check
          %p1761 = pneg %p293
        $region66: #{tpu_custom_call.1} parent=59 // pred_check_branch
          %1763 = sbr.rel (%p1761) target = $region68
        $region67: #{tpu_custom_call.1} parent=59 // pred_region
          %s1765 = ssub.s32 2048, 2048
          %1766 = vsyncadd %s1741, %s1765
          %s1767 = smul.addr %s29, 16
          %s1768 = smul.addr %s1767, 128
          %s1769 = scalar_lea.hbm %s11, %s1768
          %s1770 = sshll.u32 %s1744, 4
          %s1771 = int_to_ptr.vmem [resolvable:$true] %s1770
          %1776 = dma.vmem_to_hbm [thread:$0]  %s1771, 2048, %s1769, %s1741, 128, 128, 8
        $region68: #{tpu_custom_call.1} parent=59 // pred_fallthru
          _
      $region60: #{tpu_custom_call.1} parent=5 // pred_fallthru
        _
      %p1777 = scmp.le.s32.totalorder 2, %s24
      // Predicated region
      $region69: #{tpu_custom_call.1} parent=5 // pred_check
        %p1778 = pneg %p1777
      $region70: #{tpu_custom_call.1} parent=5 // pred_check_branch
        %1780 = sbr.rel (%p1778) target = $region72
      $region71: #{tpu_custom_call.1} parent=5 // pred_region
        %s1781 = ssub.s32 %s24, 2
        // Predicated region
        $region73: #{tpu_custom_call.1} parent=71 // pred_check
          %p1782 = pneg %p273
        $region74: #{tpu_custom_call.1} parent=71 // pred_check_branch
          %1784 = sbr.rel (%p1782) target = $region76
        $region75: #{tpu_custom_call.1} parent=71 // pred_region
          %s1785 = sand.u32 %s258, 1
          %s1786 = scalar_lea.sflag [#allocation3], %s1785
          %s1787 = sand.u32 %s258, 1
          %s1788 = smul.addr %s1787, 32
          %s1789 = scalar_lea.vmem [#allocation2], %s1788
          %1790 = dma.done %s1786, 512
        $region76: #{tpu_custom_call.1} parent=71 // pred_fallthru
          _
        // Predicated region
        $region77: #{tpu_custom_call.1} parent=71 // pred_check
          %p1791 = pneg %p299
        $region78: #{tpu_custom_call.1} parent=71 // pred_check_branch
          %1793 = sbr.rel (%p1791) target = $region80
        $region79: #{tpu_custom_call.1} parent=71 // pred_region
          %s1794 = sand.u32 %s284, 1
          %s1795 = scalar_lea.sflag [#allocation5], %s1794
          %s1796 = sand.u32 %s284, 1
          %s1797 = smul.addr %s1796, 128
          %s1798 = scalar_lea.vmem [#allocation4], %s1797
          %1799 = dma.done %s1795, 2048
        $region80: #{tpu_custom_call.1} parent=71 // pred_fallthru
          _
      $region72: #{tpu_custom_call.1} parent=5 // pred_fallthru
        _
    $region6: #{tpu_custom_call.1} parent=1 // loop_footer
      %s28 = sadd.s32 1, %s24
    $region7: #{tpu_custom_call.1} parent=1 // loop_footer_branch
      %23 = sbr.rel target = $region3
    $region8: #{tpu_custom_call.1} parent=1 // loop_exit
      _
    %1800 = vsyncpa [#allocation3], 1
    %s1801 = scalar_lea.sflag [#allocation3], 1
    %1802 = vsyncpa %s1801, 1
    %1803 = vsyncpa [#allocation5], 1
    %s1804 = scalar_lea.sflag [#allocation5], 1
    %1805 = vsyncpa %s1804, 1

</llo_original>
